<compile_context>
chip_gen: v7x
topology: tpu7x:2x2x1
jax: 0.10.0
libtpu: 0.0.40
codegen_flags: <defaults>
</compile_context>

<pallas_src>
import math
import numpy as np

import jax
import jax.numpy as jnp
from jax import lax
from jax.experimental import pallas as pl
from jax.experimental.pallas import tpu as pltpu

BIN = 64                                   # HorizontalPoolingPyramid bin_num=[64]
PAD = 4                                    # max temporal dilation (dilations are 1, 2, 4)
TAP_OFFSETS = (-4, -2, -1, 0, 1, 2, 4)     # union of all three branches' tap offsets
LANES = 128


# --------------------------------------------------------------------------
# Fused kernel: HPP pooling + (3 dilated convs + cumulative gates + biases) as one matmul
# --------------------------------------------------------------------------
def temporal_gate_kernel(x_ref, w_ref, b_ref, o_ref):
    # x_ref : [1, G, S, P*Cin]   lane-dense per-sample block (no time padding)
    # w_ref : [7*Cin, NP]        combined union-tap weights (cumulative gates folded in)
    # b_ref : [1, NP]            cumulative biases [b1 | b1+b2 | b1+b2+b4 | 0 ...]
    # o_ref : [1, S, P, NP]      lane-dense output slab [t_f | t_s | t_l | 0 ...]
    _, G, S, PC = x_ref.shape
    P = o_ref.shape[2]
    Cin = PC // P
    NP = o_ref.shape[3]

    # ---- HPP: mean + max over the G elements of each horizontal bin (lane-dense VPU work).
    # Read one g-slice from the ref per iteration so only the slice + two accumulators are live.
    acc = x_ref[0, 0].astype(jnp.float32)
    mx = acc
    for g in range(1, G):                                   # G is small and static
        xg = x_ref[0, g].astype(jnp.float32)
        acc = acc + xg
        mx = jnp.maximum(mx, xg)
    pooled = acc * (1.0 / G) + mx                           # [S, P*Cin]

    # ---- in-register time halo (replaces the HBM-side pad of x): zero rows are exactly the
    # zero padding the PyTorch convs apply to xf along the time axis.
    pooled = pooled.reshape(S, P, Cin)                      # tiny one-off lane split
    zpad = jnp.zeros((PAD, P, Cin), jnp.float32)
    pooled_pad = jnp.concatenate([zpad, pooled, zpad], axis=0)   # [S + 2*PAD, P, Cin]

    # ---- all three dilated convs + cumulative gates + biases as ONE MXU contraction over the
    # union tap set {-4,-2,-1,0,+1,+2,+4}.
    xk = jnp.concatenate(
        [pooled_pad[PAD + o: PAD + o + S] for o in TAP_OFFSETS], axis=-1)   # [S, P, 7*Cin]
    xk = xk.reshape(S * P, len(TAP_OFFSETS) * Cin)
    out = jnp.dot(xk, w_ref[...], preferred_element_type=jnp.float32) + b_ref[...]
    o_ref[0] = out.reshape(S, P, NP).astype(o_ref.dtype)


# --------------------------------------------------------------------------
# Parameter folding: one combined weight / cumulative bias for all three branches
# --------------------------------------------------------------------------
def _fold_params(params, c_in, c_out, n_pad):
    """Build combined weight [7*Cin, n_pad] and cumulative bias [1, n_pad].

    Output columns: [0:C)=t_f, [C:2C)=t_s, [2C:3C)=t_l, remaining columns are zero lane padding.
    Cumulative gates: t_s = conv1 + conv2 (+ b1 + b2), t_l = conv1 + conv2 + conv4 (+ b1+b2+b4).
    Per-branch weights are stored as [tap, Cin, Cout] with taps at offsets (-d, 0, +d).
    """
    oi = {o: k for k, o in enumerate(TAP_OFFSETS)}
    wc = jnp.zeros((len(TAP_OFFSETS), c_in, n_pad), jnp.float32)

    def fold(wc, w3, d, branches):
        for k, off in enumerate((-d, 0, d)):
            for b in branches:
                wc = wc.at[oi[off], :, b * c_out:(b + 1) * c_out].add(w3[k])
        return wc

    wc = fold(wc, params["w1"], 1, (0, 1, 2))
    wc = fold(wc, params["w2"], 2, (1, 2))
    wc = fold(wc, params["w4"], 4, (2,))

    b1, b2, b4 = params["b1"], params["b2"], params["b4"]
    bias = jnp.zeros((1, n_pad), jnp.float32)
    bias = bias.at[0, 0 * c_out:1 * c_out].set(b1)
    bias = bias.at[0, 1 * c_out:2 * c_out].set(b1 + b2)
    bias = bias.at[0, 2 * c_out:3 * c_out].set(b1 + b2 + b4)
    return wc.reshape(len(TAP_OFFSETS) * c_in, n_pad), bias


# --------------------------------------------------------------------------
# Wrapper
# --------------------------------------------------------------------------
def temporal_gate_forward(x, params):
    """x: [n, c, s, h, w]  ->  [n, s, out_c, BIN, 3]  (== PyTorch TemporalGate.forward)."""
    n, c, s, h, w = x.shape
    P = BIN
    assert (h * w) % P == 0, "h*w must be divisible by bin_num"
    G = (h * w) // P
    c_out = params["w1"].shape[-1]
    cout3 = 3 * c_out
    n_pad = ((cout3 + LANES - 1) // LANES) * LANES          # lane-dense output width

    # [n,c,s,h,w] -> channels-last -> lane-dense flatten of the adjacent (P, c) pair.
    x_g = x.reshape(n, c, s, P, G)                          # free reshape
    x_cl = jnp.transpose(x_g, (0, 4, 2, 3, 1)).reshape(n, G, s, P * c)   # [n, G, s, P*c]

    w_comb, bias = _fold_params(params, c, c_out, n_pad)

    out_slab = pl.pallas_call(
        temporal_gate_kernel,
        out_shape=jax.ShapeDtypeStruct((n, s, P, n_pad), jnp.float32),
        grid=(n,),
        in_specs=[
            pl.BlockSpec((1, G, s, P * c), lambda i: (i, 0, 0, 0)),
            pl.BlockSpec((len(TAP_OFFSETS) * c, n_pad), lambda i: (0, 0)),
            pl.BlockSpec((1, n_pad), lambda i: (0, 0)),
        ],
        out_specs=pl.BlockSpec((1, s, P, n_pad), lambda i: (i, 0, 0, 0)),
        compiler_params=pltpu.CompilerParams(
            dimension_semantics=("parallel",),               # batch axis -> both v7x TensorCores
            vmem_limit_bytes=32 * 1024 * 1024,
        ),
    )(x_cl, w_comb, bias)

    # Slice off the lane padding and permute to PyTorch's [n, s, C, P, 3] layout.  The trailing
    # dim of 3 can never be lane-dense, so this permute is left to XLA; drop it if the consumer
    # accepts the lane-dense slab.
    out = out_slab[..., :cout3].reshape(n, s, P, 3, c_out).transpose(0, 1, 4, 2, 3)
    return out


# --------------------------------------------------------------------------
# Pure-JAX reference (same math, independent formulation) for validation
# --------------------------------------------------------------------------
def temporal_gate_reference(x, p):
    n, c, s, h, w = x.shape
    P = BIN
    G = (h * w) // P
    hp = lax.Precision.HIGHEST

    z = jnp.transpose(x, (0, 2, 1, 3, 4)).reshape(n * s, c, P, G)
    feat = jnp.mean(z, axis=-1) + jnp.max(z, axis=-1)            # [n*s, c, P]
    xf = feat.reshape(n, s, c, P).transpose(0, 2, 1, 3)          # [n, c, s, P]

    def dconv(w3, bias, d):
        xp = jnp.pad(xf, ((0, 0), (0, 0), (d, d), (0, 0)))
        y = sum(jnp.einsum("ncsp,co->nosp", xp[:, :, k * d:k * d + s, :], w3[k],
                           precision=hp) for k in range(3))
        return y + bias[None, :, None, None]

    t_f = dconv(p["w1"], p["b1"], 1)
    t_s = dconv(p["w2"], p["b2"], 2) + t_f
    t_l = dconv(p["w4"], p["b4"], 4) + t_s
    t = jnp.stack([t_f, t_s, t_l], axis=-1)                      # [n, Cout, s, P, 3]
    return jnp.transpose(t, (0, 2, 1, 3, 4))                     # [n, s, Cout, P, 3]


# --------------------------------------------------------------------------
def make_params(key, in_c, out_c):
    ks = jax.random.split(key, 6)

    def conv_w(k):
        # Conv2d(in_c, out_c, (3,1)) weight stored as [tap, Cin, Cout]
        # (a real PyTorch checkpoint [Cout, Cin, 3, 1] would need w.squeeze(-1).permute(2,1,0)).
        return jax.random.normal(k, (3, in_c, out_c), jnp.float32) / math.sqrt(3 * in_c)

    def conv_b(k):
        return 0.1 * jax.random.normal(k, (out_c,), jnp.float32)

    return {
        "w1": conv_w(ks[0]), "b1": conv_b(ks[1]),
        "w2": conv_w(ks[2]), "b2": conv_b(ks[3]),
        "w4": conv_w(ks[4]), "b4": conv_b(ks[5]),
    }


if __name__ == "__main__":
    n, in_c, out_c, s, h, w = 2, 4, 32, 8, 16, 16        # h*w = 256 = BIN * 4
    key = jax.random.PRNGKey(0)
    kx, kp = jax.random.split(key)
    x = jax.random.normal(kx, (n, in_c, s, h, w), jnp.float32)   # [n, c, s, h, w]
    params = make_params(kp, in_c, out_c)

    out = jax.block_until_ready(jax.jit(temporal_gate_forward)(x, params))
    ref = jax.block_until_ready(temporal_gate_reference(x, params))

    np.testing.assert_allclose(np.asarray(out), np.asarray(ref), rtol=2e-3, atol=2e-3)
    assert out.shape == (n, s, out_c, BIN, 3)
    print("KERNEL_OK")
</pallas_src>

<mosaic_0001>
module attributes {stable_mosaic.version = 11 : i64} {
  func.func @temporal_gate_kernel(%arg0: i32, %arg1: memref<1x4x8x256xf32, #tpu.memory_space<vmem>>, %arg2: memref<28x128xf32, #tpu.memory_space<vmem>>, %arg3: memref<1x128xf32, #tpu.memory_space<vmem>>, %arg4: memref<1x8x64x128xf32, #tpu.memory_space<vmem>>) attributes {dimension_semantics = [#tpu.dimension_semantics<parallel>], iteration_bounds = array<i64: 2>, scalar_prefetch = 0 : i64, scratch_operands = 0 : i64, tpu.core_type = #tpu.core_type<tc>, window_params = [{transform_indices = @transform_0, window_bounds = array<i64: 1, 4, 8, 256>}, {pipeline_mode = #tpu.pipeline_mode<synchronous>, transform_indices = @transform_1, window_bounds = array<i64: 28, 128>}, {pipeline_mode = #tpu.pipeline_mode<synchronous>, transform_indices = @transform_2, window_bounds = array<i64: 1, 128>}, {transform_indices = @transform_3, window_bounds = array<i64: 1, 8, 64, 128>}]} {
    %c0 = arith.constant 0 : index
    %c0_0 = arith.constant 0 : index
    %c0_1 = arith.constant 0 : index
    %c0_2 = arith.constant 0 : index
    %0 = vector.load %arg1[%c0, %c0_0, %c0_1, %c0_2] : memref<1x4x8x256xf32, #tpu.memory_space<vmem>>, vector<1x1x8x256xf32>
    %1 = vector.shape_cast %0 : vector<1x1x8x256xf32> to vector<8x256xf32>
    %c0_3 = arith.constant 0 : index
    %c1 = arith.constant 1 : index
    %c0_4 = arith.constant 0 : index
    %c0_5 = arith.constant 0 : index
    %2 = vector.load %arg1[%c0_3, %c1, %c0_4, %c0_5] : memref<1x4x8x256xf32, #tpu.memory_space<vmem>>, vector<1x1x8x256xf32>
    %3 = vector.shape_cast %2 : vector<1x1x8x256xf32> to vector<8x256xf32>
    %4 = arith.addf %1, %3 : vector<8x256xf32>
    %5 = arith.maximumf %1, %3 : vector<8x256xf32>
    %c0_6 = arith.constant 0 : index
    %c2 = arith.constant 2 : index
    %c0_7 = arith.constant 0 : index
    %c0_8 = arith.constant 0 : index
    %6 = vector.load %arg1[%c0_6, %c2, %c0_7, %c0_8] : memref<1x4x8x256xf32, #tpu.memory_space<vmem>>, vector<1x1x8x256xf32>
    %7 = vector.shape_cast %6 : vector<1x1x8x256xf32> to vector<8x256xf32>
    %8 = arith.addf %4, %7 : vector<8x256xf32>
    %9 = arith.maximumf %5, %7 : vector<8x256xf32>
    %c0_9 = arith.constant 0 : index
    %c3 = arith.constant 3 : index
    %c0_10 = arith.constant 0 : index
    %c0_11 = arith.constant 0 : index
    %10 = vector.load %arg1[%c0_9, %c3, %c0_10, %c0_11] : memref<1x4x8x256xf32, #tpu.memory_space<vmem>>, vector<1x1x8x256xf32>
    %11 = vector.shape_cast %10 : vector<1x1x8x256xf32> to vector<8x256xf32>
    %12 = arith.addf %8, %11 : vector<8x256xf32>
    %13 = arith.maximumf %9, %11 : vector<8x256xf32>
    %cst = arith.constant 2.500000e-01 : f32
    %14 = vector.broadcast %cst : f32 to vector<8x256xf32>
    %15 = arith.mulf %12, %14 : vector<8x256xf32>
    %16 = arith.addf %15, %13 : vector<8x256xf32>
    %17 = vector.shape_cast %16 : vector<8x256xf32> to vector<8x64x4xf32>
    %cst_12 = arith.constant 0.000000e+00 : f32
    %18 = vector.broadcast %cst_12 : f32 to vector<4x64x4xf32>
    %19 = tpu.concatenate %18, %17, %18 in 0 : vector<4x64x4xf32>, vector<8x64x4xf32>, vector<4x64x4xf32> -> vector<16x64x4xf32>
    %20 = vector.extract_strided_slice %19 {offsets = [0, 0, 0], sizes = [8, 64, 4], strides = [1, 1, 1]} : vector<16x64x4xf32> to vector<8x64x4xf32>
    %21 = vector.extract_strided_slice %19 {offsets = [2, 0, 0], sizes = [8, 64, 4], strides = [1, 1, 1]} : vector<16x64x4xf32> to vector<8x64x4xf32>
    %22 = vector.extract_strided_slice %19 {offsets = [3, 0, 0], sizes = [8, 64, 4], strides = [1, 1, 1]} : vector<16x64x4xf32> to vector<8x64x4xf32>
    %23 = vector.extract_strided_slice %19 {offsets = [4, 0, 0], sizes = [8, 64, 4], strides = [1, 1, 1]} : vector<16x64x4xf32> to vector<8x64x4xf32>
    %24 = vector.extract_strided_slice %19 {offsets = [5, 0, 0], sizes = [8, 64, 4], strides = [1, 1, 1]} : vector<16x64x4xf32> to vector<8x64x4xf32>
    %25 = vector.extract_strided_slice %19 {offsets = [6, 0, 0], sizes = [8, 64, 4], strides = [1, 1, 1]} : vector<16x64x4xf32> to vector<8x64x4xf32>
    %26 = vector.extract_strided_slice %19 {offsets = [8, 0, 0], sizes = [8, 64, 4], strides = [1, 1, 1]} : vector<16x64x4xf32> to vector<8x64x4xf32>
    %27 = tpu.concatenate %20, %21, %22, %23, %24, %25, %26 in 2 : vector<8x64x4xf32>, vector<8x64x4xf32>, vector<8x64x4xf32>, vector<8x64x4xf32>, vector<8x64x4xf32>, vector<8x64x4xf32>, vector<8x64x4xf32> -> vector<8x64x28xf32>
    %28 = vector.shape_cast %27 : vector<8x64x28xf32> to vector<512x28xf32>
    %c0_13 = arith.constant 0 : index
    %c0_14 = arith.constant 0 : index
    %29 = vector.load %arg2[%c0_13, %c0_14] : memref<28x128xf32, #tpu.memory_space<vmem>>, vector<28x128xf32>
    %cst_15 = arith.constant dense<0.000000e+00> : vector<512x128xf32>
    %30 = tpu.matmul %28, %29, %cst_15 {dimension_numbers = #tpu.dot_dimension_numbers<[1], [0], [0], [1], [0, 0, 1, 1], [], []>} : vector<512x28xf32>, vector<28x128xf32>, vector<512x128xf32> -> vector<512x128xf32>
    %c0_16 = arith.constant 0 : index
    %c0_17 = arith.constant 0 : index
    %31 = vector.load %arg3[%c0_16, %c0_17] : memref<1x128xf32, #tpu.memory_space<vmem>>, vector<1x128xf32>
    %32 = vector.broadcast %31 : vector<1x128xf32> to vector<512x128xf32>
    %33 = arith.addf %30, %32 : vector<512x128xf32>
    %34 = vector.shape_cast %33 : vector<512x128xf32> to vector<8x64x128xf32>
    %c0_18 = arith.constant 0 : index
    %c0_19 = arith.constant 0 : index
    %c0_20 = arith.constant 0 : index
    %c0_21 = arith.constant 0 : index
    %35 = vector.load %arg4[%c0_18, %c0_19, %c0_20, %c0_21] : memref<1x8x64x128xf32, #tpu.memory_space<vmem>>, vector<1x8x64x128xf32>
    %36 = vector.shape_cast %35 : vector<1x8x64x128xf32> to vector<8x64x128xf32>
    %37 = vector.shape_cast %34 : vector<8x64x128xf32> to vector<1x8x64x128xf32>
    tpu.vector_store %arg4[%c0_18, %c0_19, %c0_20, %c0_21], %37 {strides = array<i32>} : memref<1x8x64x128xf32, #tpu.memory_space<vmem>>, vector<1x8x64x128xf32>,
    return
  }
  func.func @transform_0(%arg0: i32) -> (i32, i32, i32, i32) {
    %c0_i32 = arith.constant 0 : i32
    %c0_i32_0 = arith.constant 0 : i32
    %c0_i32_1 = arith.constant 0 : i32
    %c0_i32_2 = arith.constant 0 : i32
    return %arg0, %c0_i32, %c0_i32_0, %c0_i32_1 : i32, i32, i32, i32
  }
  func.func @transform_1(%arg0: i32) -> (i32, i32) {
    %c0_i32 = arith.constant 0 : i32
    %c0_i32_0 = arith.constant 0 : i32
    %c0_i32_1 = arith.constant 0 : i32
    return %c0_i32, %c0_i32_0 : i32, i32
  }
  func.func @transform_2(%arg0: i32) -> (i32, i32) {
    %c0_i32 = arith.constant 0 : i32
    %c0_i32_0 = arith.constant 0 : i32
    %c0_i32_1 = arith.constant 0 : i32
    return %c0_i32, %c0_i32_0 : i32, i32
  }
  func.func @transform_3(%arg0: i32) -> (i32, i32, i32, i32) {
    %c0_i32 = arith.constant 0 : i32
    %c0_i32_0 = arith.constant 0 : i32
    %c0_i32_1 = arith.constant 0 : i32
    %c0_i32_2 = arith.constant 0 : i32
    return %arg0, %c0_i32, %c0_i32_0, %c0_i32_1 : i32, i32, i32, i32
  }
}

</mosaic_0001>

<llo_original>
// kernel: temporal_gate_forward.1
$region0: #{temporal_gate_forward.1}
  #allocation0 [shape = 'u32[]', space=smem, size = 0x4, offset = 0x4, fixed_abs, tag = 'smem constant byte address 0x4 - core index']
  #allocation1 [shape = 'u32[144,128]{1,0:T(1,128)}', space=vmem, size = 0x12000, scoped, tag = 'internal scratch']
  %s0 = inlined_call_operand.vmem [shape: f32[2,4,8,256], index: 0, kind: input, shape index: {}]
  %s1 = inlined_call_operand.vmem [shape: f32[28,128], index: 1, kind: input, shape index: {}]
  %s2 = inlined_call_operand.vmem [shape: f32[1,128], index: 2, kind: input, shape index: {}]
  %s3 = inlined_call_operand.vmem [shape: f32[2,8,64,128], index: 3, kind: output, shape index: {}]
  %s4 = sld [smem:[#allocation0]]
  $region45: #{temporal_gate_forward.1} parent=0
    _
  %s6 = ssub.s32 1, %s4
  %s7 = scalar_select 0, %s6, %s4
  loop: start=0, step=1, limit=4
  $region2: #{temporal_gate_forward.1} parent=0 // loop_pre_header
    _
  $region3: #{temporal_gate_forward.1} parent=0 // loop_header
    %s9 = sphi 0, %s13
    %p10 = scmp.ge.s32.totalorder %s9, 4
    %s19 = sphi 0, %s21
    %s22 = sphi 0, %s19
    %s23 = sphi 0, %s22
    %s39 = sphi 0, %s23
    %s43 = sphi 0, %s43
    %s45 = sphi 0, %s43
    %s46 = sphi 0, %s45
    %s60 = sphi 0, %s46
    %s64 = sphi 0, %s64
    %s66 = sphi 0, %s64
    %s67 = sphi 0, %s66
    %s81 = sphi 0, %s67
    %s87 = sphi 0, %s89
    %s90 = sphi 0, %s87
    %s91 = sphi 0, %s90
    %s107 = sphi 0, %s91
  $region4: #{temporal_gate_forward.1} parent=0 // loop_header_branch
    %12 = sbr.rel (%p10) target = $region8
  $region5: #{temporal_gate_forward.1} parent=0 // loop_body
    %s14 = ssub.s32 %s9, 1
    %s15 = ssub.s32 %s9, 2
    %s16 = sadd.s32 %s9, 1
    %s17 = ssub.s32 %s9, %s16
    %p18 = scmp.eq.s32.totalorder %s17, 0
    %s20 = sadd.s32 %s19, 1
    %s21 = scalar_select %p18, %s19, %s20
    %p24 = pneg %p18
    %p25 = scmp.eq.s32.totalorder %s9, 1
    %p26 = por %p24, %p25
    %p27 = scmp.ne.s32.totalorder %s19, %s22
    %p28 = scmp.eq.s32.totalorder %s9, 0
    %p29 = por %p27, %p28
    %p30 = scmp.ne.s32.totalorder %s19, %s22
    %p31 = scmp.eq.s32.totalorder %s14, 1
    %p32 = por %p30, %p31
    %p33 = scmp.ne.s32.totalorder %s22, %s23
    %p34 = scmp.eq.s32.totalorder %s14, 0
    %p35 = por %p33, %p34
    %p36 = scmp.ne.s32.totalorder %s22, %s23
    %p37 = scmp.eq.s32.totalorder %s15, 1
    %p38 = por %p36, %p37
    %p40 = scmp.ne.s32.totalorder %s23, %s39
    %p41 = scmp.eq.s32.totalorder %s15, 0
    %p42 = por %p40, %p41
    %s44 = sadd.s32 %s43, 1
    %p47 = scmp.eq.s32.totalorder %s9, 1
    %p48 = scmp.ne.s32.totalorder %s43, %s45
    %p49 = scmp.eq.s32.totalorder %s9, 0
    %p50 = por %p48, %p49
    %p51 = scmp.ne.s32.totalorder %s43, %s45
    %p52 = scmp.eq.s32.totalorder %s14, 1
    %p53 = por %p51, %p52
    %p54 = scmp.ne.s32.totalorder %s45, %s46
    %p55 = scmp.eq.s32.totalorder %s14, 0
    %p56 = por %p54, %p55
    %p57 = scmp.ne.s32.totalorder %s45, %s46
    %p58 = scmp.eq.s32.totalorder %s15, 1
    %p59 = por %p57, %p58
    %p61 = scmp.ne.s32.totalorder %s46, %s60
    %p62 = scmp.eq.s32.totalorder %s15, 0
    %p63 = por %p61, %p62
    %s65 = sadd.s32 %s64, 1
    %p68 = scmp.eq.s32.totalorder %s9, 1
    %p69 = scmp.ne.s32.totalorder %s64, %s66
    %p70 = scmp.eq.s32.totalorder %s9, 0
    %p71 = por %p69, %p70
    %p72 = scmp.ne.s32.totalorder %s64, %s66
    %p73 = scmp.eq.s32.totalorder %s14, 1
    %p74 = por %p72, %p73
    %p75 = scmp.ne.s32.totalorder %s66, %s67
    %p76 = scmp.eq.s32.totalorder %s14, 0
    %p77 = por %p75, %p76
    %p78 = scmp.ne.s32.totalorder %s66, %s67
    %p79 = scmp.eq.s32.totalorder %s15, 1
    %p80 = por %p78, %p79
    %p82 = scmp.ne.s32.totalorder %s67, %s81
    %p83 = scmp.eq.s32.totalorder %s15, 0
    %p84 = por %p82, %p83
    %s85 = ssub.s32 %s9, %s16
    %p86 = scmp.eq.s32.totalorder %s85, 0
    %s88 = sadd.s32 %s87, 1
    %s89 = scalar_select %p86, %s87, %s88
    %p92 = pneg %p86
    %p93 = scmp.eq.s32.totalorder %s9, 1
    %p94 = por %p92, %p93
    %p95 = scmp.ne.s32.totalorder %s87, %s90
    %p96 = scmp.eq.s32.totalorder %s9, 0
    %p97 = por %p95, %p96
    %p98 = scmp.ne.s32.totalorder %s87, %s90
    %p99 = scmp.eq.s32.totalorder %s14, 1
    %p100 = por %p98, %p99
    %p101 = scmp.ne.s32.totalorder %s90, %s91
    %p102 = scmp.eq.s32.totalorder %s14, 0
    %p103 = por %p101, %p102
    %p104 = scmp.ne.s32.totalorder %s90, %s91
    %p105 = scmp.eq.s32.totalorder %s15, 1
    %p106 = por %p104, %p105
    %p108 = scmp.ne.s32.totalorder %s91, %s107
    %p109 = scmp.eq.s32.totalorder %s15, 0
    %p110 = por %p108, %p109
    %p111 = scmp.le.s32.totalorder 1, %s9
    %p112 = scmp.lt.s32.totalorder %s9, 3
    %p113 = pnand %p111, %p112
    %p114 = pneg %p113
    // Predicated region
    $region9: #{temporal_gate_forward.1} parent=5 // pred_check
      _
    $region10: #{temporal_gate_forward.1} parent=5 // pred_check_branch
      %116 = sbr.rel (%p113) target = $region12
    $region11: #{temporal_gate_forward.1} parent=5 // pred_region
      %s117 = ssub.s32 %s9, 1
      // Predicated region
      $region13: #{temporal_gate_forward.1} parent=11 // pred_check
        %p118 = pneg %p56
      $region14: #{temporal_gate_forward.1} parent=11 // pred_check_branch
        %120 = sbr.rel (%p118) target = $region16
      $region15: #{temporal_gate_forward.1} parent=11 // pred_region
        _
      $region16: #{temporal_gate_forward.1} parent=11 // pred_fallthru
        _
      // Predicated region
      $region17: #{temporal_gate_forward.1} parent=11 // pred_check
        %p121 = pneg %p77
      $region18: #{temporal_gate_forward.1} parent=11 // pred_check_branch
        %123 = sbr.rel (%p121) target = $region20
      $region19: #{temporal_gate_forward.1} parent=11 // pred_region
        _
      $region20: #{temporal_gate_forward.1} parent=11 // pred_fallthru
        _
    $region12: #{temporal_gate_forward.1} parent=5 // pred_fallthru
      _
    %p124 = scmp.lt.s32.totalorder %s9, 2
    // Predicated region
    $region21: #{temporal_gate_forward.1} parent=5 // pred_check
      %p125 = pneg %p124
    $region22: #{temporal_gate_forward.1} parent=5 // pred_check_branch
      %127 = sbr.rel (%p125) target = $region24
    $region23: #{temporal_gate_forward.1} parent=5 // pred_region
      // Predicated region
      $region25: #{temporal_gate_forward.1} parent=23 // pred_check
        %p128 = pneg %p29
      $region26: #{temporal_gate_forward.1} parent=23 // pred_check_branch
        %130 = sbr.rel (%p128) target = $region28
      $region27: #{temporal_gate_forward.1} parent=23 // pred_region
        %p131 = scmp.lt.s32.totalorder %s9, 1
        %s132 = scalar_select %p131, %s9, 1
        %s133 = smul.addr %s132, 8
        %s134 = smul.addr %s133, 8
        %s135 = scalar_lea.vmem %s0, %s134
      $region28: #{temporal_gate_forward.1} parent=23 // pred_fallthru
        _
    $region24: #{temporal_gate_forward.1} parent=5 // pred_fallthru
      _
    %p136 = scmp.le.s32.totalorder 1, %s9
    %p137 = scmp.lt.s32.totalorder %s9, 3
    %p138 = pnand %p136, %p137
    %p139 = pneg %p138
    // Predicated region
    $region29: #{temporal_gate_forward.1} parent=5 // pred_check
      _
    $region30: #{temporal_gate_forward.1} parent=5 // pred_check_branch
      %141 = sbr.rel (%p138) target = $region32
    $region31: #{temporal_gate_forward.1} parent=5 // pred_region
      %s142 = ssub.s32 %s9, 1
      %p143 = scmp.lt.s32.totalorder %s14, 1
      %s144 = scalar_select %p143, %s14, 1
      %s145 = smul.addr %s144, 8
      %s146 = smul.addr %s145, 8
      %s147 = scalar_lea.vmem %s0, %s146
      %p148 = pneg %p35
      %p149 = pneg %p32
      %p150 = pneg %p56
      %p151 = pneg %p53
      %p152 = pneg %p77
      %p153 = pneg %p74
      %p154 = pneg %p103
      %p155 = pneg %p100
      %p156 = scmp.lt.s32.totalorder %s14, 1
      %s157 = scalar_select %p156, %s14, 1
      %s158 = smul.addr %s157, 64
      %s159 = smul.addr %s158, 8
      %s160 = scalar_lea.vmem %s3, %s159
      %p161 = scmp.lt.s32.totalorder %s14, 1
      %s162 = scalar_select %p161, %s14, 1
      %s163 = smul.addr %s162, 8
      %s164 = smul.addr %s163, 8
      %s165 = scalar_lea.vmem %s0, %s164
      %p166 = scmp.lt.s32.totalorder %s14, 1
      %s167 = scalar_select %p166, %s14, 1
      %s168 = smul.addr %s167, 64
      %s169 = smul.addr %s168, 8
      %s170 = scalar_lea.vmem %s3, %s169
      %v171 = vld [vmem:[%s165] sm:$0xff]
      %v172 = vld [vmem:[%s165 + $0x8] sm:$0xff]
      %s173 = scalar_lea.vmem %s165, 16
      %v174 = vld [vmem:[%s173] sm:$0xff]
      %v175 = vld [vmem:[%s173 + $0x8] sm:$0xff]
      %v176 = vadd.f32 %v171, %v174
      %v177 = vadd.f32 %v172, %v175
      %v178 = vmax.f32 %v171, %v174
      %v179 = vmax.f32 %v172, %v175
      %s180 = scalar_lea.vmem %s165, 32
      %v181 = vld [vmem:[%s180] sm:$0xff]
      %v182 = vld [vmem:[%s180 + $0x8] sm:$0xff]
      %v183 = vadd.f32 %v176, %v181
      %v184 = vadd.f32 %v177, %v182
      %v185 = vmax.f32 %v178, %v181
      %v186 = vmax.f32 %v179, %v182
      %s187 = scalar_lea.vmem %s165, 48
      %v188 = vld [vmem:[%s187] sm:$0xff]
      %v189 = vld [vmem:[%s187 + $0x8] sm:$0xff]
      %v190 = vadd.f32 %v183, %v188
      %v191 = vadd.f32 %v184, %v189
      %v192 = vmax.f32 %v185, %v188
      %v193 = vmax.f32 %v186, %v189
      %v194 = vmul.f32 %v190, 0.25
      %v195 = vmul.f32 %v191, 0.25
      %v196 = vadd.f32 %v194, %v192
      %v197 = vadd.f32 %v195, %v193
      %199 = vrot.lane.b32.xlu0 %v196, 124
      %v200 = vpop.permute.xlu0 %199
      %202 = vrot.lane.b32.xlu0 %v196, 120
      %v203 = vpop.permute.xlu0 %202
      %205 = vrot.lane.b32.xlu0 %v196, 116
      %v206 = vpop.permute.xlu0 %205
      %208 = vrot.lane.b32.xlu0 %v196, 112
      %v209 = vpop.permute.xlu0 %208
      %211 = vrot.lane.b32.xlu0 %v196, 108
      %v212 = vpop.permute.xlu0 %211
      %214 = vrot.lane.b32.xlu0 %v196, 104
      %v215 = vpop.permute.xlu0 %214
      %217 = vrot.lane.b32.xlu0 %v196, 100
      %v218 = vpop.permute.xlu0 %217
      %220 = vrot.lane.b32.xlu0 %v196, 96
      %v221 = vpop.permute.xlu0 %220
      %223 = vrot.lane.b32.xlu0 %v196, 92
      %v224 = vpop.permute.xlu0 %223
      %226 = vrot.lane.b32.xlu0 %v196, 88
      %v227 = vpop.permute.xlu0 %226
      %229 = vrot.lane.b32.xlu0 %v196, 84
      %v230 = vpop.permute.xlu0 %229
      %232 = vrot.lane.b32.xlu0 %v196, 80
      %v233 = vpop.permute.xlu0 %232
      %235 = vrot.lane.b32.xlu0 %v196, 76
      %v236 = vpop.permute.xlu0 %235
      %238 = vrot.lane.b32.xlu0 %v196, 72
      %v239 = vpop.permute.xlu0 %238
      %241 = vrot.lane.b32.xlu0 %v196, 68
      %v242 = vpop.permute.xlu0 %241
      %244 = vrot.lane.b32.xlu0 %v196, 64
      %v245 = vpop.permute.xlu0 %244
      %247 = vrot.lane.b32.xlu0 %v196, 60
      %v248 = vpop.permute.xlu0 %247
      %250 = vrot.lane.b32.xlu0 %v196, 56
      %v251 = vpop.permute.xlu0 %250
      %253 = vrot.lane.b32.xlu0 %v196, 52
      %v254 = vpop.permute.xlu0 %253
      %256 = vrot.lane.b32.xlu0 %v196, 48
      %v257 = vpop.permute.xlu0 %256
      %259 = vrot.lane.b32.xlu0 %v196, 44
      %v260 = vpop.permute.xlu0 %259
      %262 = vrot.lane.b32.xlu0 %v196, 40
      %v263 = vpop.permute.xlu0 %262
      %265 = vrot.lane.b32.xlu0 %v196, 36
      %v266 = vpop.permute.xlu0 %265
      %268 = vrot.lane.b32.xlu0 %v196, 32
      %v269 = vpop.permute.xlu0 %268
      %271 = vrot.lane.b32.xlu0 %v196, 28
      %v272 = vpop.permute.xlu0 %271
      %274 = vrot.lane.b32.xlu0 %v196, 24
      %v275 = vpop.permute.xlu0 %274
      %277 = vrot.lane.b32.xlu0 %v196, 20
      %v278 = vpop.permute.xlu0 %277
      %280 = vrot.lane.b32.xlu0 %v196, 16
      %v281 = vpop.permute.xlu0 %280
      %283 = vrot.lane.b32.xlu0 %v196, 12
      %v284 = vpop.permute.xlu0 %283
      %286 = vrot.lane.b32.xlu0 %v196, 8
      %v287 = vpop.permute.xlu0 %286
      %289 = vrot.lane.b32.xlu0 %v196, 4
      %v290 = vpop.permute.xlu0 %289
      %293 = vrot.lane.b32.xlu0 %v197, 124
      %v294 = vpop.permute.xlu0 %293
      %296 = vrot.lane.b32.xlu0 %v197, 120
      %v297 = vpop.permute.xlu0 %296
      %299 = vrot.lane.b32.xlu0 %v197, 116
      %v300 = vpop.permute.xlu0 %299
      %302 = vrot.lane.b32.xlu0 %v197, 112
      %v303 = vpop.permute.xlu0 %302
      %305 = vrot.lane.b32.xlu0 %v197, 108
      %v306 = vpop.permute.xlu0 %305
      %308 = vrot.lane.b32.xlu0 %v197, 104
      %v309 = vpop.permute.xlu0 %308
      %311 = vrot.lane.b32.xlu0 %v197, 100
      %v312 = vpop.permute.xlu0 %311
      %314 = vrot.lane.b32.xlu0 %v197, 96
      %v315 = vpop.permute.xlu0 %314
      %317 = vrot.lane.b32.xlu0 %v197, 92
      %v318 = vpop.permute.xlu0 %317
      %320 = vrot.lane.b32.xlu0 %v197, 88
      %v321 = vpop.permute.xlu0 %320
      %323 = vrot.lane.b32.xlu0 %v197, 84
      %v324 = vpop.permute.xlu0 %323
      %326 = vrot.lane.b32.xlu0 %v197, 80
      %v327 = vpop.permute.xlu0 %326
      %329 = vrot.lane.b32.xlu0 %v197, 76
      %v330 = vpop.permute.xlu0 %329
      %332 = vrot.lane.b32.xlu0 %v197, 72
      %v333 = vpop.permute.xlu0 %332
      %335 = vrot.lane.b32.xlu0 %v197, 68
      %v336 = vpop.permute.xlu0 %335
      %338 = vrot.lane.b32.xlu0 %v197, 64
      %v339 = vpop.permute.xlu0 %338
      %341 = vrot.lane.b32.xlu0 %v197, 60
      %v342 = vpop.permute.xlu0 %341
      %344 = vrot.lane.b32.xlu0 %v197, 56
      %v345 = vpop.permute.xlu0 %344
      %347 = vrot.lane.b32.xlu0 %v197, 52
      %v348 = vpop.permute.xlu0 %347
      %350 = vrot.lane.b32.xlu0 %v197, 48
      %v351 = vpop.permute.xlu0 %350
      %353 = vrot.lane.b32.xlu0 %v197, 44
      %v354 = vpop.permute.xlu0 %353
      %356 = vrot.lane.b32.xlu0 %v197, 40
      %v357 = vpop.permute.xlu0 %356
      %359 = vrot.lane.b32.xlu0 %v197, 36
      %v360 = vpop.permute.xlu0 %359
      %362 = vrot.lane.b32.xlu0 %v197, 32
      %v363 = vpop.permute.xlu0 %362
      %365 = vrot.lane.b32.xlu0 %v197, 28
      %v366 = vpop.permute.xlu0 %365
      %368 = vrot.lane.b32.xlu0 %v197, 24
      %v369 = vpop.permute.xlu0 %368
      %371 = vrot.lane.b32.xlu0 %v197, 20
      %v372 = vpop.permute.xlu0 %371
      %374 = vrot.lane.b32.xlu0 %v197, 16
      %v375 = vpop.permute.xlu0 %374
      %377 = vrot.lane.b32.xlu0 %v197, 12
      %v378 = vpop.permute.xlu0 %377
      %380 = vrot.lane.b32.xlu0 %v197, 8
      %v381 = vpop.permute.xlu0 %380
      %383 = vrot.lane.b32.xlu0 %v197, 4
      %v384 = vpop.permute.xlu0 %383
      %v386 = vcombine.low %v196, %v203
      %v387 = vcombine.high %v196, %v203
      %v389 = vunpack.c.l.s4 1983009808
      %v390 = vunpack.c.0.s8 %v389
      %v391 = vlaneseq
      %v392 = vshrl.u32 %v391, 7
      %v393 = vsub.s32 %v390, %v392
      %v394 = vrot.slane %v386, %v393
      %v396 = vunpack.c.l.s4 1983009808
      %v397 = vunpack.c.0.s8 %v396
      %v398 = vlaneseq
      %v399 = vshrl.u32 %v398, 7
      %v400 = vsub.s32 %v397, %v399
      %v401 = vrot.slane %v387, %v400
      %v402 = vcombine.low %v200, %v206
      %v403 = vcombine.high %v200, %v206
      %v405 = vunpack.c.l.s4 1983009808
      %v406 = vunpack.c.0.s8 %v405
      %v407 = vlaneseq
      %v408 = vshrl.u32 %v407, 7
      %v409 = vsub.s32 %v406, %v408
      %v410 = vrot.slane %v402, %v409
      %v412 = vunpack.c.l.s4 1983009808
      %v413 = vunpack.c.0.s8 %v412
      %v414 = vlaneseq
      %v415 = vshrl.u32 %v414, 7
      %v416 = vsub.s32 %v413, %v415
      %v417 = vrot.slane %v403, %v416
      %v418 = vcombine.low %v209, %v215
      %v419 = vcombine.high %v209, %v215
      %v421 = vunpack.c.l.s4 1983009808
      %v422 = vunpack.c.0.s8 %v421
      %v423 = vlaneseq
      %v424 = vshrl.u32 %v423, 7
      %v425 = vsub.s32 %v422, %v424
      %v426 = vrot.slane %v418, %v425
      %v428 = vunpack.c.l.s4 1983009808
      %v429 = vunpack.c.0.s8 %v428
      %v430 = vlaneseq
      %v431 = vshrl.u32 %v430, 7
      %v432 = vsub.s32 %v429, %v431
      %v433 = vrot.slane %v419, %v432
      %v434 = vcombine.low %v212, %v218
      %v435 = vcombine.high %v212, %v218
      %v437 = vunpack.c.l.s4 1983009808
      %v438 = vunpack.c.0.s8 %v437
      %v439 = vlaneseq
      %v440 = vshrl.u32 %v439, 7
      %v441 = vsub.s32 %v438, %v440
      %v442 = vrot.slane %v434, %v441
      %v444 = vunpack.c.l.s4 1983009808
      %v445 = vunpack.c.0.s8 %v444
      %v446 = vlaneseq
      %v447 = vshrl.u32 %v446, 7
      %v448 = vsub.s32 %v445, %v447
      %v449 = vrot.slane %v435, %v448
      %v450 = vcombine.low %v394, %v410
      %v451 = vcombine.high %v394, %v410
      %v453 = vunpack.c.l.s4 1934713408
      %v454 = vunpack.c.0.s8 %v453
      %v455 = vlaneseq
      %v456 = vshrl.u32 %v455, 7
      %v457 = vsub.s32 %v454, %v456
      %v458 = vrot.slane %v450, %v457
      %v460 = vunpack.c.l.s4 1934713408
      %v461 = vunpack.c.0.s8 %v460
      %v462 = vlaneseq
      %v463 = vshrl.u32 %v462, 7
      %v464 = vsub.s32 %v461, %v463
      %v465 = vrot.slane %v451, %v464
      %v466 = vcombine.low %v401, %v417
      %v467 = vcombine.high %v401, %v417
      %v469 = vunpack.c.l.s4 1934713408
      %v470 = vunpack.c.0.s8 %v469
      %v471 = vlaneseq
      %v472 = vshrl.u32 %v471, 7
      %v473 = vsub.s32 %v470, %v472
      %v474 = vrot.slane %v466, %v473
      %v476 = vunpack.c.l.s4 1934713408
      %v477 = vunpack.c.0.s8 %v476
      %v478 = vlaneseq
      %v479 = vshrl.u32 %v478, 7
      %v480 = vsub.s32 %v477, %v479
      %v481 = vrot.slane %v467, %v480
      %v482 = vcombine.low %v426, %v442
      %v483 = vcombine.high %v426, %v442
      %v485 = vunpack.c.l.s4 1934713408
      %v486 = vunpack.c.0.s8 %v485
      %v487 = vlaneseq
      %v488 = vshrl.u32 %v487, 7
      %v489 = vsub.s32 %v486, %v488
      %v490 = vrot.slane %v482, %v489
      %v492 = vunpack.c.l.s4 1934713408
      %v493 = vunpack.c.0.s8 %v492
      %v494 = vlaneseq
      %v495 = vshrl.u32 %v494, 7
      %v496 = vsub.s32 %v493, %v495
      %v497 = vrot.slane %v483, %v496
      %v498 = vcombine.low %v433, %v449
      %v499 = vcombine.high %v433, %v449
      %v501 = vunpack.c.l.s4 1934713408
      %v502 = vunpack.c.0.s8 %v501
      %v503 = vlaneseq
      %v504 = vshrl.u32 %v503, 7
      %v505 = vsub.s32 %v502, %v504
      %v506 = vrot.slane %v498, %v505
      %v508 = vunpack.c.l.s4 1934713408
      %v509 = vunpack.c.0.s8 %v508
      %v510 = vlaneseq
      %v511 = vshrl.u32 %v510, 7
      %v512 = vsub.s32 %v509, %v511
      %v513 = vrot.slane %v499, %v512
      %v514 = vcombine.low %v458, %v490
      %v515 = vcombine.high %v458, %v490
      %v516 = vcombine.low %v465, %v497
      %v517 = vcombine.high %v465, %v497
      %v518 = vcombine.low %v474, %v506
      %v519 = vcombine.high %v474, %v506
      %v520 = vcombine.low %v481, %v513
      %v521 = vcombine.high %v481, %v513
      %v522 = vcombine.low %v221, %v227
      %v523 = vcombine.high %v221, %v227
      %v525 = vunpack.c.l.s4 1983009808
      %v526 = vunpack.c.0.s8 %v525
      %v527 = vlaneseq
      %v528 = vshrl.u32 %v527, 7
      %v529 = vsub.s32 %v526, %v528
      %v530 = vrot.slane %v522, %v529
      %v532 = vunpack.c.l.s4 1983009808
      %v533 = vunpack.c.0.s8 %v532
      %v534 = vlaneseq
      %v535 = vshrl.u32 %v534, 7
      %v536 = vsub.s32 %v533, %v535
      %v537 = vrot.slane %v523, %v536
      %v538 = vcombine.low %v224, %v230
      %v539 = vcombine.high %v224, %v230
      %v541 = vunpack.c.l.s4 1983009808
      %v542 = vunpack.c.0.s8 %v541
      %v543 = vlaneseq
      %v544 = vshrl.u32 %v543, 7
      %v545 = vsub.s32 %v542, %v544
      %v546 = vrot.slane %v538, %v545
      %v548 = vunpack.c.l.s4 1983009808
      %v549 = vunpack.c.0.s8 %v548
      %v550 = vlaneseq
      %v551 = vshrl.u32 %v550, 7
      %v552 = vsub.s32 %v549, %v551
      %v553 = vrot.slane %v539, %v552
      %v554 = vcombine.low %v233, %v239
      %v555 = vcombine.high %v233, %v239
      %v557 = vunpack.c.l.s4 1983009808
      %v558 = vunpack.c.0.s8 %v557
      %v559 = vlaneseq
      %v560 = vshrl.u32 %v559, 7
      %v561 = vsub.s32 %v558, %v560
      %v562 = vrot.slane %v554, %v561
      %v564 = vunpack.c.l.s4 1983009808
      %v565 = vunpack.c.0.s8 %v564
      %v566 = vlaneseq
      %v567 = vshrl.u32 %v566, 7
      %v568 = vsub.s32 %v565, %v567
      %v569 = vrot.slane %v555, %v568
      %v570 = vcombine.low %v236, %v242
      %v571 = vcombine.high %v236, %v242
      %v573 = vunpack.c.l.s4 1983009808
      %v574 = vunpack.c.0.s8 %v573
      %v575 = vlaneseq
      %v576 = vshrl.u32 %v575, 7
      %v577 = vsub.s32 %v574, %v576
      %v578 = vrot.slane %v570, %v577
      %v580 = vunpack.c.l.s4 1983009808
      %v581 = vunpack.c.0.s8 %v580
      %v582 = vlaneseq
      %v583 = vshrl.u32 %v582, 7
      %v584 = vsub.s32 %v581, %v583
      %v585 = vrot.slane %v571, %v584
      %v586 = vcombine.low %v530, %v546
      %v587 = vcombine.high %v530, %v546
      %v589 = vunpack.c.l.s4 1934713408
      %v590 = vunpack.c.0.s8 %v589
      %v591 = vlaneseq
      %v592 = vshrl.u32 %v591, 7
      %v593 = vsub.s32 %v590, %v592
      %v594 = vrot.slane %v586, %v593
      %v596 = vunpack.c.l.s4 1934713408
      %v597 = vunpack.c.0.s8 %v596
      %v598 = vlaneseq
      %v599 = vshrl.u32 %v598, 7
      %v600 = vsub.s32 %v597, %v599
      %v601 = vrot.slane %v587, %v600
      %v602 = vcombine.low %v537, %v553
      %v603 = vcombine.high %v537, %v553
      %v605 = vunpack.c.l.s4 1934713408
      %v606 = vunpack.c.0.s8 %v605
      %v607 = vlaneseq
      %v608 = vshrl.u32 %v607, 7
      %v609 = vsub.s32 %v606, %v608
      %v610 = vrot.slane %v602, %v609
      %v612 = vunpack.c.l.s4 1934713408
      %v613 = vunpack.c.0.s8 %v612
      %v614 = vlaneseq
      %v615 = vshrl.u32 %v614, 7
      %v616 = vsub.s32 %v613, %v615
      %v617 = vrot.slane %v603, %v616
      %v618 = vcombine.low %v562, %v578
      %v619 = vcombine.high %v562, %v578
      %v621 = vunpack.c.l.s4 1934713408
      %v622 = vunpack.c.0.s8 %v621
      %v623 = vlaneseq
      %v624 = vshrl.u32 %v623, 7
      %v625 = vsub.s32 %v622, %v624
      %v626 = vrot.slane %v618, %v625
      %v628 = vunpack.c.l.s4 1934713408
      %v629 = vunpack.c.0.s8 %v628
      %v630 = vlaneseq
      %v631 = vshrl.u32 %v630, 7
      %v632 = vsub.s32 %v629, %v631
      %v633 = vrot.slane %v619, %v632
      %v634 = vcombine.low %v569, %v585
      %v635 = vcombine.high %v569, %v585
      %v637 = vunpack.c.l.s4 1934713408
      %v638 = vunpack.c.0.s8 %v637
      %v639 = vlaneseq
      %v640 = vshrl.u32 %v639, 7
      %v641 = vsub.s32 %v638, %v640
      %v642 = vrot.slane %v634, %v641
      %v644 = vunpack.c.l.s4 1934713408
      %v645 = vunpack.c.0.s8 %v644
      %v646 = vlaneseq
      %v647 = vshrl.u32 %v646, 7
      %v648 = vsub.s32 %v645, %v647
      %v649 = vrot.slane %v635, %v648
      %v650 = vcombine.low %v594, %v626
      %v651 = vcombine.high %v594, %v626
      %v652 = vcombine.low %v601, %v633
      %v653 = vcombine.high %v601, %v633
      %v654 = vcombine.low %v610, %v642
      %v655 = vcombine.high %v610, %v642
      %v656 = vcombine.low %v617, %v649
      %v657 = vcombine.high %v617, %v649
      %v658 = vcombine.low %v245, %v251
      %v659 = vcombine.high %v245, %v251
      %v661 = vunpack.c.l.s4 1983009808
      %v662 = vunpack.c.0.s8 %v661
      %v663 = vlaneseq
      %v664 = vshrl.u32 %v663, 7
      %v665 = vsub.s32 %v662, %v664
      %v666 = vrot.slane %v658, %v665
      %v668 = vunpack.c.l.s4 1983009808
      %v669 = vunpack.c.0.s8 %v668
      %v670 = vlaneseq
      %v671 = vshrl.u32 %v670, 7
      %v672 = vsub.s32 %v669, %v671
      %v673 = vrot.slane %v659, %v672
      %v674 = vcombine.low %v248, %v254
      %v675 = vcombine.high %v248, %v254
      %v677 = vunpack.c.l.s4 1983009808
      %v678 = vunpack.c.0.s8 %v677
      %v679 = vlaneseq
      %v680 = vshrl.u32 %v679, 7
      %v681 = vsub.s32 %v678, %v680
      %v682 = vrot.slane %v674, %v681
      %v684 = vunpack.c.l.s4 1983009808
      %v685 = vunpack.c.0.s8 %v684
      %v686 = vlaneseq
      %v687 = vshrl.u32 %v686, 7
      %v688 = vsub.s32 %v685, %v687
      %v689 = vrot.slane %v675, %v688
      %v690 = vcombine.low %v257, %v263
      %v691 = vcombine.high %v257, %v263
      %v693 = vunpack.c.l.s4 1983009808
      %v694 = vunpack.c.0.s8 %v693
      %v695 = vlaneseq
      %v696 = vshrl.u32 %v695, 7
      %v697 = vsub.s32 %v694, %v696
      %v698 = vrot.slane %v690, %v697
      %v700 = vunpack.c.l.s4 1983009808
      %v701 = vunpack.c.0.s8 %v700
      %v702 = vlaneseq
      %v703 = vshrl.u32 %v702, 7
      %v704 = vsub.s32 %v701, %v703
      %v705 = vrot.slane %v691, %v704
      %v706 = vcombine.low %v260, %v266
      %v707 = vcombine.high %v260, %v266
      %v709 = vunpack.c.l.s4 1983009808
      %v710 = vunpack.c.0.s8 %v709
      %v711 = vlaneseq
      %v712 = vshrl.u32 %v711, 7
      %v713 = vsub.s32 %v710, %v712
      %v714 = vrot.slane %v706, %v713
      %v716 = vunpack.c.l.s4 1983009808
      %v717 = vunpack.c.0.s8 %v716
      %v718 = vlaneseq
      %v719 = vshrl.u32 %v718, 7
      %v720 = vsub.s32 %v717, %v719
      %v721 = vrot.slane %v707, %v720
      %v722 = vcombine.low %v666, %v682
      %v723 = vcombine.high %v666, %v682
      %v725 = vunpack.c.l.s4 1934713408
      %v726 = vunpack.c.0.s8 %v725
      %v727 = vlaneseq
      %v728 = vshrl.u32 %v727, 7
      %v729 = vsub.s32 %v726, %v728
      %v730 = vrot.slane %v722, %v729
      %v732 = vunpack.c.l.s4 1934713408
      %v733 = vunpack.c.0.s8 %v732
      %v734 = vlaneseq
      %v735 = vshrl.u32 %v734, 7
      %v736 = vsub.s32 %v733, %v735
      %v737 = vrot.slane %v723, %v736
      %v738 = vcombine.low %v673, %v689
      %v739 = vcombine.high %v673, %v689
      %v741 = vunpack.c.l.s4 1934713408
      %v742 = vunpack.c.0.s8 %v741
      %v743 = vlaneseq
      %v744 = vshrl.u32 %v743, 7
      %v745 = vsub.s32 %v742, %v744
      %v746 = vrot.slane %v738, %v745
      %v748 = vunpack.c.l.s4 1934713408
      %v749 = vunpack.c.0.s8 %v748
      %v750 = vlaneseq
      %v751 = vshrl.u32 %v750, 7
      %v752 = vsub.s32 %v749, %v751
      %v753 = vrot.slane %v739, %v752
      %v754 = vcombine.low %v698, %v714
      %v755 = vcombine.high %v698, %v714
      %v757 = vunpack.c.l.s4 1934713408
      %v758 = vunpack.c.0.s8 %v757
      %v759 = vlaneseq
      %v760 = vshrl.u32 %v759, 7
      %v761 = vsub.s32 %v758, %v760
      %v762 = vrot.slane %v754, %v761
      %v764 = vunpack.c.l.s4 1934713408
      %v765 = vunpack.c.0.s8 %v764
      %v766 = vlaneseq
      %v767 = vshrl.u32 %v766, 7
      %v768 = vsub.s32 %v765, %v767
      %v769 = vrot.slane %v755, %v768
      %v770 = vcombine.low %v705, %v721
      %v771 = vcombine.high %v705, %v721
      %v773 = vunpack.c.l.s4 1934713408
      %v774 = vunpack.c.0.s8 %v773
      %v775 = vlaneseq
      %v776 = vshrl.u32 %v775, 7
      %v777 = vsub.s32 %v774, %v776
      %v778 = vrot.slane %v770, %v777
      %v780 = vunpack.c.l.s4 1934713408
      %v781 = vunpack.c.0.s8 %v780
      %v782 = vlaneseq
      %v783 = vshrl.u32 %v782, 7
      %v784 = vsub.s32 %v781, %v783
      %v785 = vrot.slane %v771, %v784
      %v786 = vcombine.low %v730, %v762
      %v787 = vcombine.high %v730, %v762
      %v788 = vcombine.low %v737, %v769
      %v789 = vcombine.high %v737, %v769
      %v790 = vcombine.low %v746, %v778
      %v791 = vcombine.high %v746, %v778
      %v792 = vcombine.low %v753, %v785
      %v793 = vcombine.high %v753, %v785
      %v794 = vcombine.low %v269, %v275
      %v795 = vcombine.high %v269, %v275
      %v797 = vunpack.c.l.s4 1983009808
      %v798 = vunpack.c.0.s8 %v797
      %v799 = vlaneseq
      %v800 = vshrl.u32 %v799, 7
      %v801 = vsub.s32 %v798, %v800
      %v802 = vrot.slane %v794, %v801
      %v804 = vunpack.c.l.s4 1983009808
      %v805 = vunpack.c.0.s8 %v804
      %v806 = vlaneseq
      %v807 = vshrl.u32 %v806, 7
      %v808 = vsub.s32 %v805, %v807
      %v809 = vrot.slane %v795, %v808
      %v810 = vcombine.low %v272, %v278
      %v811 = vcombine.high %v272, %v278
      %v813 = vunpack.c.l.s4 1983009808
      %v814 = vunpack.c.0.s8 %v813
      %v815 = vlaneseq
      %v816 = vshrl.u32 %v815, 7
      %v817 = vsub.s32 %v814, %v816
      %v818 = vrot.slane %v810, %v817
      %v820 = vunpack.c.l.s4 1983009808
      %v821 = vunpack.c.0.s8 %v820
      %v822 = vlaneseq
      %v823 = vshrl.u32 %v822, 7
      %v824 = vsub.s32 %v821, %v823
      %v825 = vrot.slane %v811, %v824
      %v826 = vcombine.low %v281, %v287
      %v827 = vcombine.high %v281, %v287
      %v829 = vunpack.c.l.s4 1983009808
      %v830 = vunpack.c.0.s8 %v829
      %v831 = vlaneseq
      %v832 = vshrl.u32 %v831, 7
      %v833 = vsub.s32 %v830, %v832
      %v834 = vrot.slane %v826, %v833
      %v836 = vunpack.c.l.s4 1983009808
      %v837 = vunpack.c.0.s8 %v836
      %v838 = vlaneseq
      %v839 = vshrl.u32 %v838, 7
      %v840 = vsub.s32 %v837, %v839
      %v841 = vrot.slane %v827, %v840
      %v842 = vcombine.low %v284, %v290
      %v843 = vcombine.high %v284, %v290
      %v845 = vunpack.c.l.s4 1983009808
      %v846 = vunpack.c.0.s8 %v845
      %v847 = vlaneseq
      %v848 = vshrl.u32 %v847, 7
      %v849 = vsub.s32 %v846, %v848
      %v850 = vrot.slane %v842, %v849
      %v852 = vunpack.c.l.s4 1983009808
      %v853 = vunpack.c.0.s8 %v852
      %v854 = vlaneseq
      %v855 = vshrl.u32 %v854, 7
      %v856 = vsub.s32 %v853, %v855
      %v857 = vrot.slane %v843, %v856
      %v858 = vcombine.low %v802, %v818
      %v859 = vcombine.high %v802, %v818
      %v861 = vunpack.c.l.s4 1934713408
      %v862 = vunpack.c.0.s8 %v861
      %v863 = vlaneseq
      %v864 = vshrl.u32 %v863, 7
      %v865 = vsub.s32 %v862, %v864
      %v866 = vrot.slane %v858, %v865
      %v868 = vunpack.c.l.s4 1934713408
      %v869 = vunpack.c.0.s8 %v868
      %v870 = vlaneseq
      %v871 = vshrl.u32 %v870, 7
      %v872 = vsub.s32 %v869, %v871
      %v873 = vrot.slane %v859, %v872
      %v874 = vcombine.low %v809, %v825
      %v875 = vcombine.high %v809, %v825
      %v877 = vunpack.c.l.s4 1934713408
      %v878 = vunpack.c.0.s8 %v877
      %v879 = vlaneseq
      %v880 = vshrl.u32 %v879, 7
      %v881 = vsub.s32 %v878, %v880
      %v882 = vrot.slane %v874, %v881
      %v884 = vunpack.c.l.s4 1934713408
      %v885 = vunpack.c.0.s8 %v884
      %v886 = vlaneseq
      %v887 = vshrl.u32 %v886, 7
      %v888 = vsub.s32 %v885, %v887
      %v889 = vrot.slane %v875, %v888
      %v890 = vcombine.low %v834, %v850
      %v891 = vcombine.high %v834, %v850
      %v893 = vunpack.c.l.s4 1934713408
      %v894 = vunpack.c.0.s8 %v893
      %v895 = vlaneseq
      %v896 = vshrl.u32 %v895, 7
      %v897 = vsub.s32 %v894, %v896
      %v898 = vrot.slane %v890, %v897
      %v900 = vunpack.c.l.s4 1934713408
      %v901 = vunpack.c.0.s8 %v900
      %v902 = vlaneseq
      %v903 = vshrl.u32 %v902, 7
      %v904 = vsub.s32 %v901, %v903
      %v905 = vrot.slane %v891, %v904
      %v906 = vcombine.low %v841, %v857
      %v907 = vcombine.high %v841, %v857
      %v909 = vunpack.c.l.s4 1934713408
      %v910 = vunpack.c.0.s8 %v909
      %v911 = vlaneseq
      %v912 = vshrl.u32 %v911, 7
      %v913 = vsub.s32 %v910, %v912
      %v914 = vrot.slane %v906, %v913
      %v916 = vunpack.c.l.s4 1934713408
      %v917 = vunpack.c.0.s8 %v916
      %v918 = vlaneseq
      %v919 = vshrl.u32 %v918, 7
      %v920 = vsub.s32 %v917, %v919
      %v921 = vrot.slane %v907, %v920
      %v922 = vcombine.low %v866, %v898
      %v923 = vcombine.high %v866, %v898
      %v924 = vcombine.low %v873, %v905
      %v925 = vcombine.high %v873, %v905
      %v926 = vcombine.low %v882, %v914
      %v927 = vcombine.high %v882, %v914
      %v928 = vcombine.low %v889, %v921
      %v929 = vcombine.high %v889, %v921
      %v930 = vcombine.low %v197, %v297
      %v931 = vcombine.high %v197, %v297
      %v933 = vunpack.c.l.s4 1983009808
      %v934 = vunpack.c.0.s8 %v933
      %v935 = vlaneseq
      %v936 = vshrl.u32 %v935, 7
      %v937 = vsub.s32 %v934, %v936
      %v938 = vrot.slane %v930, %v937
      %v940 = vunpack.c.l.s4 1983009808
      %v941 = vunpack.c.0.s8 %v940
      %v942 = vlaneseq
      %v943 = vshrl.u32 %v942, 7
      %v944 = vsub.s32 %v941, %v943
      %v945 = vrot.slane %v931, %v944
      %v946 = vcombine.low %v294, %v300
      %v947 = vcombine.high %v294, %v300
      %v949 = vunpack.c.l.s4 1983009808
      %v950 = vunpack.c.0.s8 %v949
      %v951 = vlaneseq
      %v952 = vshrl.u32 %v951, 7
      %v953 = vsub.s32 %v950, %v952
      %v954 = vrot.slane %v946, %v953
      %v956 = vunpack.c.l.s4 1983009808
      %v957 = vunpack.c.0.s8 %v956
      %v958 = vlaneseq
      %v959 = vshrl.u32 %v958, 7
      %v960 = vsub.s32 %v957, %v959
      %v961 = vrot.slane %v947, %v960
      %v962 = vcombine.low %v303, %v309
      %v963 = vcombine.high %v303, %v309
      %v965 = vunpack.c.l.s4 1983009808
      %v966 = vunpack.c.0.s8 %v965
      %v967 = vlaneseq
      %v968 = vshrl.u32 %v967, 7
      %v969 = vsub.s32 %v966, %v968
      %v970 = vrot.slane %v962, %v969
      %v972 = vunpack.c.l.s4 1983009808
      %v973 = vunpack.c.0.s8 %v972
      %v974 = vlaneseq
      %v975 = vshrl.u32 %v974, 7
      %v976 = vsub.s32 %v973, %v975
      %v977 = vrot.slane %v963, %v976
      %v978 = vcombine.low %v306, %v312
      %v979 = vcombine.high %v306, %v312
      %v981 = vunpack.c.l.s4 1983009808
      %v982 = vunpack.c.0.s8 %v981
      %v983 = vlaneseq
      %v984 = vshrl.u32 %v983, 7
      %v985 = vsub.s32 %v982, %v984
      %v986 = vrot.slane %v978, %v985
      %v988 = vunpack.c.l.s4 1983009808
      %v989 = vunpack.c.0.s8 %v988
      %v990 = vlaneseq
      %v991 = vshrl.u32 %v990, 7
      %v992 = vsub.s32 %v989, %v991
      %v993 = vrot.slane %v979, %v992
      %v994 = vcombine.low %v938, %v954
      %v995 = vcombine.high %v938, %v954
      %v997 = vunpack.c.l.s4 1934713408
      %v998 = vunpack.c.0.s8 %v997
      %v999 = vlaneseq
      %v1000 = vshrl.u32 %v999, 7
      %v1001 = vsub.s32 %v998, %v1000
      %v1002 = vrot.slane %v994, %v1001
      %v1004 = vunpack.c.l.s4 1934713408
      %v1005 = vunpack.c.0.s8 %v1004
      %v1006 = vlaneseq
      %v1007 = vshrl.u32 %v1006, 7
      %v1008 = vsub.s32 %v1005, %v1007
      %v1009 = vrot.slane %v995, %v1008
      %v1010 = vcombine.low %v945, %v961
      %v1011 = vcombine.high %v945, %v961
      %v1013 = vunpack.c.l.s4 1934713408
      %v1014 = vunpack.c.0.s8 %v1013
      %v1015 = vlaneseq
      %v1016 = vshrl.u32 %v1015, 7
      %v1017 = vsub.s32 %v1014, %v1016
      %v1018 = vrot.slane %v1010, %v1017
      %v1020 = vunpack.c.l.s4 1934713408
      %v1021 = vunpack.c.0.s8 %v1020
      %v1022 = vlaneseq
      %v1023 = vshrl.u32 %v1022, 7
      %v1024 = vsub.s32 %v1021, %v1023
      %v1025 = vrot.slane %v1011, %v1024
      %v1026 = vcombine.low %v970, %v986
      %v1027 = vcombine.high %v970, %v986
      %v1029 = vunpack.c.l.s4 1934713408
      %v1030 = vunpack.c.0.s8 %v1029
      %v1031 = vlaneseq
      %v1032 = vshrl.u32 %v1031, 7
      %v1033 = vsub.s32 %v1030, %v1032
      %v1034 = vrot.slane %v1026, %v1033
      %v1036 = vunpack.c.l.s4 1934713408
      %v1037 = vunpack.c.0.s8 %v1036
      %v1038 = vlaneseq
      %v1039 = vshrl.u32 %v1038, 7
      %v1040 = vsub.s32 %v1037, %v1039
      %v1041 = vrot.slane %v1027, %v1040
      %v1042 = vcombine.low %v977, %v993
      %v1043 = vcombine.high %v977, %v993
      %v1045 = vunpack.c.l.s4 1934713408
      %v1046 = vunpack.c.0.s8 %v1045
      %v1047 = vlaneseq
      %v1048 = vshrl.u32 %v1047, 7
      %v1049 = vsub.s32 %v1046, %v1048
      %v1050 = vrot.slane %v1042, %v1049
      %v1052 = vunpack.c.l.s4 1934713408
      %v1053 = vunpack.c.0.s8 %v1052
      %v1054 = vlaneseq
      %v1055 = vshrl.u32 %v1054, 7
      %v1056 = vsub.s32 %v1053, %v1055
      %v1057 = vrot.slane %v1043, %v1056
      %v1058 = vcombine.low %v1002, %v1034
      %v1059 = vcombine.high %v1002, %v1034
      %v1060 = vcombine.low %v1009, %v1041
      %v1061 = vcombine.high %v1009, %v1041
      %v1062 = vcombine.low %v1018, %v1050
      %v1063 = vcombine.high %v1018, %v1050
      %v1064 = vcombine.low %v1025, %v1057
      %v1065 = vcombine.high %v1025, %v1057
      %v1066 = vcombine.low %v315, %v321
      %v1067 = vcombine.high %v315, %v321
      %v1069 = vunpack.c.l.s4 1983009808
      %v1070 = vunpack.c.0.s8 %v1069
      %v1071 = vlaneseq
      %v1072 = vshrl.u32 %v1071, 7
      %v1073 = vsub.s32 %v1070, %v1072
      %v1074 = vrot.slane %v1066, %v1073
      %v1076 = vunpack.c.l.s4 1983009808
      %v1077 = vunpack.c.0.s8 %v1076
      %v1078 = vlaneseq
      %v1079 = vshrl.u32 %v1078, 7
      %v1080 = vsub.s32 %v1077, %v1079
      %v1081 = vrot.slane %v1067, %v1080
      %v1082 = vcombine.low %v318, %v324
      %v1083 = vcombine.high %v318, %v324
      %v1085 = vunpack.c.l.s4 1983009808
      %v1086 = vunpack.c.0.s8 %v1085
      %v1087 = vlaneseq
      %v1088 = vshrl.u32 %v1087, 7
      %v1089 = vsub.s32 %v1086, %v1088
      %v1090 = vrot.slane %v1082, %v1089
      %v1092 = vunpack.c.l.s4 1983009808
      %v1093 = vunpack.c.0.s8 %v1092
      %v1094 = vlaneseq
      %v1095 = vshrl.u32 %v1094, 7
      %v1096 = vsub.s32 %v1093, %v1095
      %v1097 = vrot.slane %v1083, %v1096
      %v1098 = vcombine.low %v327, %v333
      %v1099 = vcombine.high %v327, %v333
      %v1101 = vunpack.c.l.s4 1983009808
      %v1102 = vunpack.c.0.s8 %v1101
      %v1103 = vlaneseq
      %v1104 = vshrl.u32 %v1103, 7
      %v1105 = vsub.s32 %v1102, %v1104
      %v1106 = vrot.slane %v1098, %v1105
      %v1108 = vunpack.c.l.s4 1983009808
      %v1109 = vunpack.c.0.s8 %v1108
      %v1110 = vlaneseq
      %v1111 = vshrl.u32 %v1110, 7
      %v1112 = vsub.s32 %v1109, %v1111
      %v1113 = vrot.slane %v1099, %v1112
      %v1114 = vcombine.low %v330, %v336
      %v1115 = vcombine.high %v330, %v336
      %v1117 = vunpack.c.l.s4 1983009808
      %v1118 = vunpack.c.0.s8 %v1117
      %v1119 = vlaneseq
      %v1120 = vshrl.u32 %v1119, 7
      %v1121 = vsub.s32 %v1118, %v1120
      %v1122 = vrot.slane %v1114, %v1121
      %v1124 = vunpack.c.l.s4 1983009808
      %v1125 = vunpack.c.0.s8 %v1124
      %v1126 = vlaneseq
      %v1127 = vshrl.u32 %v1126, 7
      %v1128 = vsub.s32 %v1125, %v1127
      %v1129 = vrot.slane %v1115, %v1128
      %v1130 = vcombine.low %v1074, %v1090
      %v1131 = vcombine.high %v1074, %v1090
      %v1133 = vunpack.c.l.s4 1934713408
      %v1134 = vunpack.c.0.s8 %v1133
      %v1135 = vlaneseq
      %v1136 = vshrl.u32 %v1135, 7
      %v1137 = vsub.s32 %v1134, %v1136
      %v1138 = vrot.slane %v1130, %v1137
      %v1140 = vunpack.c.l.s4 1934713408
      %v1141 = vunpack.c.0.s8 %v1140
      %v1142 = vlaneseq
      %v1143 = vshrl.u32 %v1142, 7
      %v1144 = vsub.s32 %v1141, %v1143
      %v1145 = vrot.slane %v1131, %v1144
      %v1146 = vcombine.low %v1081, %v1097
      %v1147 = vcombine.high %v1081, %v1097
      %v1149 = vunpack.c.l.s4 1934713408
      %v1150 = vunpack.c.0.s8 %v1149
      %v1151 = vlaneseq
      %v1152 = vshrl.u32 %v1151, 7
      %v1153 = vsub.s32 %v1150, %v1152
      %v1154 = vrot.slane %v1146, %v1153
      %v1156 = vunpack.c.l.s4 1934713408
      %v1157 = vunpack.c.0.s8 %v1156
      %v1158 = vlaneseq
      %v1159 = vshrl.u32 %v1158, 7
      %v1160 = vsub.s32 %v1157, %v1159
      %v1161 = vrot.slane %v1147, %v1160
      %v1162 = vcombine.low %v1106, %v1122
      %v1163 = vcombine.high %v1106, %v1122
      %v1165 = vunpack.c.l.s4 1934713408
      %v1166 = vunpack.c.0.s8 %v1165
      %v1167 = vlaneseq
      %v1168 = vshrl.u32 %v1167, 7
      %v1169 = vsub.s32 %v1166, %v1168
      %v1170 = vrot.slane %v1162, %v1169
      %v1172 = vunpack.c.l.s4 1934713408
      %v1173 = vunpack.c.0.s8 %v1172
      %v1174 = vlaneseq
      %v1175 = vshrl.u32 %v1174, 7
      %v1176 = vsub.s32 %v1173, %v1175
      %v1177 = vrot.slane %v1163, %v1176
      %v1178 = vcombine.low %v1113, %v1129
      %v1179 = vcombine.high %v1113, %v1129
      %v1181 = vunpack.c.l.s4 1934713408
      %v1182 = vunpack.c.0.s8 %v1181
      %v1183 = vlaneseq
      %v1184 = vshrl.u32 %v1183, 7
      %v1185 = vsub.s32 %v1182, %v1184
      %v1186 = vrot.slane %v1178, %v1185
      %v1188 = vunpack.c.l.s4 1934713408
      %v1189 = vunpack.c.0.s8 %v1188
      %v1190 = vlaneseq
      %v1191 = vshrl.u32 %v1190, 7
      %v1192 = vsub.s32 %v1189, %v1191
      %v1193 = vrot.slane %v1179, %v1192
      %v1194 = vcombine.low %v1138, %v1170
      %v1195 = vcombine.high %v1138, %v1170
      %v1196 = vcombine.low %v1145, %v1177
      %v1197 = vcombine.high %v1145, %v1177
      %v1198 = vcombine.low %v1154, %v1186
      %v1199 = vcombine.high %v1154, %v1186
      %v1200 = vcombine.low %v1161, %v1193
      %v1201 = vcombine.high %v1161, %v1193
      %v1202 = vcombine.low %v339, %v345
      %v1203 = vcombine.high %v339, %v345
      %v1205 = vunpack.c.l.s4 1983009808
      %v1206 = vunpack.c.0.s8 %v1205
      %v1207 = vlaneseq
      %v1208 = vshrl.u32 %v1207, 7
      %v1209 = vsub.s32 %v1206, %v1208
      %v1210 = vrot.slane %v1202, %v1209
      %v1212 = vunpack.c.l.s4 1983009808
      %v1213 = vunpack.c.0.s8 %v1212
      %v1214 = vlaneseq
      %v1215 = vshrl.u32 %v1214, 7
      %v1216 = vsub.s32 %v1213, %v1215
      %v1217 = vrot.slane %v1203, %v1216
      %v1218 = vcombine.low %v342, %v348
      %v1219 = vcombine.high %v342, %v348
      %v1221 = vunpack.c.l.s4 1983009808
      %v1222 = vunpack.c.0.s8 %v1221
      %v1223 = vlaneseq
      %v1224 = vshrl.u32 %v1223, 7
      %v1225 = vsub.s32 %v1222, %v1224
      %v1226 = vrot.slane %v1218, %v1225
      %v1228 = vunpack.c.l.s4 1983009808
      %v1229 = vunpack.c.0.s8 %v1228
      %v1230 = vlaneseq
      %v1231 = vshrl.u32 %v1230, 7
      %v1232 = vsub.s32 %v1229, %v1231
      %v1233 = vrot.slane %v1219, %v1232
      %v1234 = vcombine.low %v351, %v357
      %v1235 = vcombine.high %v351, %v357
      %v1237 = vunpack.c.l.s4 1983009808
      %v1238 = vunpack.c.0.s8 %v1237
      %v1239 = vlaneseq
      %v1240 = vshrl.u32 %v1239, 7
      %v1241 = vsub.s32 %v1238, %v1240
      %v1242 = vrot.slane %v1234, %v1241
      %v1244 = vunpack.c.l.s4 1983009808
      %v1245 = vunpack.c.0.s8 %v1244
      %v1246 = vlaneseq
      %v1247 = vshrl.u32 %v1246, 7
      %v1248 = vsub.s32 %v1245, %v1247
      %v1249 = vrot.slane %v1235, %v1248
      %v1250 = vcombine.low %v354, %v360
      %v1251 = vcombine.high %v354, %v360
      %v1253 = vunpack.c.l.s4 1983009808
      %v1254 = vunpack.c.0.s8 %v1253
      %v1255 = vlaneseq
      %v1256 = vshrl.u32 %v1255, 7
      %v1257 = vsub.s32 %v1254, %v1256
      %v1258 = vrot.slane %v1250, %v1257
      %v1260 = vunpack.c.l.s4 1983009808
      %v1261 = vunpack.c.0.s8 %v1260
      %v1262 = vlaneseq
      %v1263 = vshrl.u32 %v1262, 7
      %v1264 = vsub.s32 %v1261, %v1263
      %v1265 = vrot.slane %v1251, %v1264
      %v1266 = vcombine.low %v1210, %v1226
      %v1267 = vcombine.high %v1210, %v1226
      %v1269 = vunpack.c.l.s4 1934713408
      %v1270 = vunpack.c.0.s8 %v1269
      %v1271 = vlaneseq
      %v1272 = vshrl.u32 %v1271, 7
      %v1273 = vsub.s32 %v1270, %v1272
      %v1274 = vrot.slane %v1266, %v1273
      %v1276 = vunpack.c.l.s4 1934713408
      %v1277 = vunpack.c.0.s8 %v1276
      %v1278 = vlaneseq
      %v1279 = vshrl.u32 %v1278, 7
      %v1280 = vsub.s32 %v1277, %v1279
      %v1281 = vrot.slane %v1267, %v1280
      %v1282 = vcombine.low %v1217, %v1233
      %v1283 = vcombine.high %v1217, %v1233
      %v1285 = vunpack.c.l.s4 1934713408
      %v1286 = vunpack.c.0.s8 %v1285
      %v1287 = vlaneseq
      %v1288 = vshrl.u32 %v1287, 7
      %v1289 = vsub.s32 %v1286, %v1288
      %v1290 = vrot.slane %v1282, %v1289
      %v1292 = vunpack.c.l.s4 1934713408
      %v1293 = vunpack.c.0.s8 %v1292
      %v1294 = vlaneseq
      %v1295 = vshrl.u32 %v1294, 7
      %v1296 = vsub.s32 %v1293, %v1295
      %v1297 = vrot.slane %v1283, %v1296
      %v1298 = vcombine.low %v1242, %v1258
      %v1299 = vcombine.high %v1242, %v1258
      %v1301 = vunpack.c.l.s4 1934713408
      %v1302 = vunpack.c.0.s8 %v1301
      %v1303 = vlaneseq
      %v1304 = vshrl.u32 %v1303, 7
      %v1305 = vsub.s32 %v1302, %v1304
      %v1306 = vrot.slane %v1298, %v1305
      %v1308 = vunpack.c.l.s4 1934713408
      %v1309 = vunpack.c.0.s8 %v1308
      %v1310 = vlaneseq
      %v1311 = vshrl.u32 %v1310, 7
      %v1312 = vsub.s32 %v1309, %v1311
      %v1313 = vrot.slane %v1299, %v1312
      %v1314 = vcombine.low %v1249, %v1265
      %v1315 = vcombine.high %v1249, %v1265
      %v1317 = vunpack.c.l.s4 1934713408
      %v1318 = vunpack.c.0.s8 %v1317
      %v1319 = vlaneseq
      %v1320 = vshrl.u32 %v1319, 7
      %v1321 = vsub.s32 %v1318, %v1320
      %v1322 = vrot.slane %v1314, %v1321
      %v1324 = vunpack.c.l.s4 1934713408
      %v1325 = vunpack.c.0.s8 %v1324
      %v1326 = vlaneseq
      %v1327 = vshrl.u32 %v1326, 7
      %v1328 = vsub.s32 %v1325, %v1327
      %v1329 = vrot.slane %v1315, %v1328
      %v1330 = vcombine.low %v1274, %v1306
      %v1331 = vcombine.high %v1274, %v1306
      %v1332 = vcombine.low %v1281, %v1313
      %v1333 = vcombine.high %v1281, %v1313
      %v1334 = vcombine.low %v1290, %v1322
      %v1335 = vcombine.high %v1290, %v1322
      %v1336 = vcombine.low %v1297, %v1329
      %v1337 = vcombine.high %v1297, %v1329
      %v1338 = vcombine.low %v363, %v369
      %v1339 = vcombine.high %v363, %v369
      %v1341 = vunpack.c.l.s4 1983009808
      %v1342 = vunpack.c.0.s8 %v1341
      %v1343 = vlaneseq
      %v1344 = vshrl.u32 %v1343, 7
      %v1345 = vsub.s32 %v1342, %v1344
      %v1346 = vrot.slane %v1338, %v1345
      %v1348 = vunpack.c.l.s4 1983009808
      %v1349 = vunpack.c.0.s8 %v1348
      %v1350 = vlaneseq
      %v1351 = vshrl.u32 %v1350, 7
      %v1352 = vsub.s32 %v1349, %v1351
      %v1353 = vrot.slane %v1339, %v1352
      %v1354 = vcombine.low %v366, %v372
      %v1355 = vcombine.high %v366, %v372
      %v1357 = vunpack.c.l.s4 1983009808
      %v1358 = vunpack.c.0.s8 %v1357
      %v1359 = vlaneseq
      %v1360 = vshrl.u32 %v1359, 7
      %v1361 = vsub.s32 %v1358, %v1360
      %v1362 = vrot.slane %v1354, %v1361
      %v1364 = vunpack.c.l.s4 1983009808
      %v1365 = vunpack.c.0.s8 %v1364
      %v1366 = vlaneseq
      %v1367 = vshrl.u32 %v1366, 7
      %v1368 = vsub.s32 %v1365, %v1367
      %v1369 = vrot.slane %v1355, %v1368
      %v1370 = vcombine.low %v375, %v381
      %v1371 = vcombine.high %v375, %v381
      %v1373 = vunpack.c.l.s4 1983009808
      %v1374 = vunpack.c.0.s8 %v1373
      %v1375 = vlaneseq
      %v1376 = vshrl.u32 %v1375, 7
      %v1377 = vsub.s32 %v1374, %v1376
      %v1378 = vrot.slane %v1370, %v1377
      %v1380 = vunpack.c.l.s4 1983009808
      %v1381 = vunpack.c.0.s8 %v1380
      %v1382 = vlaneseq
      %v1383 = vshrl.u32 %v1382, 7
      %v1384 = vsub.s32 %v1381, %v1383
      %v1385 = vrot.slane %v1371, %v1384
      %v1386 = vcombine.low %v378, %v384
      %v1387 = vcombine.high %v378, %v384
      %v1389 = vunpack.c.l.s4 1983009808
      %v1390 = vunpack.c.0.s8 %v1389
      %v1391 = vlaneseq
      %v1392 = vshrl.u32 %v1391, 7
      %v1393 = vsub.s32 %v1390, %v1392
      %v1394 = vrot.slane %v1386, %v1393
      %v1396 = vunpack.c.l.s4 1983009808
      %v1397 = vunpack.c.0.s8 %v1396
      %v1398 = vlaneseq
      %v1399 = vshrl.u32 %v1398, 7
      %v1400 = vsub.s32 %v1397, %v1399
      %v1401 = vrot.slane %v1387, %v1400
      %v1402 = vcombine.low %v1346, %v1362
      %v1403 = vcombine.high %v1346, %v1362
      %v1405 = vunpack.c.l.s4 1934713408
      %v1406 = vunpack.c.0.s8 %v1405
      %v1407 = vlaneseq
      %v1408 = vshrl.u32 %v1407, 7
      %v1409 = vsub.s32 %v1406, %v1408
      %v1410 = vrot.slane %v1402, %v1409
      %v1412 = vunpack.c.l.s4 1934713408
      %v1413 = vunpack.c.0.s8 %v1412
      %v1414 = vlaneseq
      %v1415 = vshrl.u32 %v1414, 7
      %v1416 = vsub.s32 %v1413, %v1415
      %v1417 = vrot.slane %v1403, %v1416
      %v1418 = vcombine.low %v1353, %v1369
      %v1419 = vcombine.high %v1353, %v1369
      %v1421 = vunpack.c.l.s4 1934713408
      %v1422 = vunpack.c.0.s8 %v1421
      %v1423 = vlaneseq
      %v1424 = vshrl.u32 %v1423, 7
      %v1425 = vsub.s32 %v1422, %v1424
      %v1426 = vrot.slane %v1418, %v1425
      %v1428 = vunpack.c.l.s4 1934713408
      %v1429 = vunpack.c.0.s8 %v1428
      %v1430 = vlaneseq
      %v1431 = vshrl.u32 %v1430, 7
      %v1432 = vsub.s32 %v1429, %v1431
      %v1433 = vrot.slane %v1419, %v1432
      %v1434 = vcombine.low %v1378, %v1394
      %v1435 = vcombine.high %v1378, %v1394
      %v1437 = vunpack.c.l.s4 1934713408
      %v1438 = vunpack.c.0.s8 %v1437
      %v1439 = vlaneseq
      %v1440 = vshrl.u32 %v1439, 7
      %v1441 = vsub.s32 %v1438, %v1440
      %v1442 = vrot.slane %v1434, %v1441
      %v1444 = vunpack.c.l.s4 1934713408
      %v1445 = vunpack.c.0.s8 %v1444
      %v1446 = vlaneseq
      %v1447 = vshrl.u32 %v1446, 7
      %v1448 = vsub.s32 %v1445, %v1447
      %v1449 = vrot.slane %v1435, %v1448
      %v1450 = vcombine.low %v1385, %v1401
      %v1451 = vcombine.high %v1385, %v1401
      %v1453 = vunpack.c.l.s4 1934713408
      %v1454 = vunpack.c.0.s8 %v1453
      %v1455 = vlaneseq
      %v1456 = vshrl.u32 %v1455, 7
      %v1457 = vsub.s32 %v1454, %v1456
      %v1458 = vrot.slane %v1450, %v1457
      %v1460 = vunpack.c.l.s4 1934713408
      %v1461 = vunpack.c.0.s8 %v1460
      %v1462 = vlaneseq
      %v1463 = vshrl.u32 %v1462, 7
      %v1464 = vsub.s32 %v1461, %v1463
      %v1465 = vrot.slane %v1451, %v1464
      %v1466 = vcombine.low %v1410, %v1442
      %v1467 = vcombine.high %v1410, %v1442
      %v1468 = vcombine.low %v1417, %v1449
      %v1469 = vcombine.high %v1417, %v1449
      %v1470 = vcombine.low %v1426, %v1458
      %v1471 = vcombine.high %v1426, %v1458
      %v1472 = vcombine.low %v1433, %v1465
      %v1473 = vcombine.high %v1433, %v1465
      %1523 = vrot.lane.b32.xlu0 0.0, 4
      %v1524 = vpop.permute.xlu0 %1523
      %1525 = vrot.lane.b32.xlu0 %v514, 4
      %v1526 = vpop.permute.xlu0 %1525
      %1527 = vrot.lane.b32.xlu0 %v650, 4
      %v1528 = vpop.permute.xlu0 %1527
      %1529 = vrot.lane.b32.xlu0 %v786, 4
      %v1530 = vpop.permute.xlu0 %1529
      %1531 = vrot.lane.b32.xlu0 %v922, 4
      %v1532 = vpop.permute.xlu0 %1531
      %1533 = vrot.lane.b32.xlu0 %v1058, 4
      %v1534 = vpop.permute.xlu0 %1533
      %1535 = vrot.lane.b32.xlu0 %v1194, 4
      %v1536 = vpop.permute.xlu0 %1535
      %1537 = vrot.lane.b32.xlu0 %v1330, 4
      %v1538 = vpop.permute.xlu0 %1537
      %1539 = vrot.lane.b32.xlu0 %v1466, 4
      %v1540 = vpop.permute.xlu0 %1539
      %1541 = vrot.lane.b32.xlu0 %v515, 4
      %v1542 = vpop.permute.xlu0 %1541
      %1543 = vrot.lane.b32.xlu0 %v651, 4
      %v1544 = vpop.permute.xlu0 %1543
      %1545 = vrot.lane.b32.xlu0 %v787, 4
      %v1546 = vpop.permute.xlu0 %1545
      %1547 = vrot.lane.b32.xlu0 %v923, 4
      %v1548 = vpop.permute.xlu0 %1547
      %1549 = vrot.lane.b32.xlu0 %v1059, 4
      %v1550 = vpop.permute.xlu0 %1549
      %1551 = vrot.lane.b32.xlu0 %v1195, 4
      %v1552 = vpop.permute.xlu0 %1551
      %1553 = vrot.lane.b32.xlu0 %v1331, 4
      %v1554 = vpop.permute.xlu0 %1553
      %1555 = vrot.lane.b32.xlu0 %v1467, 4
      %v1556 = vpop.permute.xlu0 %1555
      %1557 = vrot.lane.b32.xlu0 %v516, 4
      %v1558 = vpop.permute.xlu0 %1557
      %1559 = vrot.lane.b32.xlu0 %v652, 4
      %v1560 = vpop.permute.xlu0 %1559
      %1561 = vrot.lane.b32.xlu0 %v788, 4
      %v1562 = vpop.permute.xlu0 %1561
      %1563 = vrot.lane.b32.xlu0 %v924, 4
      %v1564 = vpop.permute.xlu0 %1563
      %1565 = vrot.lane.b32.xlu0 %v1060, 4
      %v1566 = vpop.permute.xlu0 %1565
      %1567 = vrot.lane.b32.xlu0 %v1196, 4
      %v1568 = vpop.permute.xlu0 %1567
      %1569 = vrot.lane.b32.xlu0 %v1332, 4
      %v1570 = vpop.permute.xlu0 %1569
      %1571 = vrot.lane.b32.xlu0 %v1468, 4
      %v1572 = vpop.permute.xlu0 %1571
      %1573 = vrot.lane.b32.xlu0 %v517, 4
      %v1574 = vpop.permute.xlu0 %1573
      %1575 = vrot.lane.b32.xlu0 %v653, 4
      %v1576 = vpop.permute.xlu0 %1575
      %1577 = vrot.lane.b32.xlu0 %v789, 4
      %v1578 = vpop.permute.xlu0 %1577
      %1579 = vrot.lane.b32.xlu0 %v925, 4
      %v1580 = vpop.permute.xlu0 %1579
      %1581 = vrot.lane.b32.xlu0 %v1061, 4
      %v1582 = vpop.permute.xlu0 %1581
      %1583 = vrot.lane.b32.xlu0 %v1197, 4
      %v1584 = vpop.permute.xlu0 %1583
      %1585 = vrot.lane.b32.xlu0 %v1333, 4
      %v1586 = vpop.permute.xlu0 %1585
      %1587 = vrot.lane.b32.xlu0 %v1469, 4
      %v1588 = vpop.permute.xlu0 %1587
      %1589 = vrot.lane.b32.xlu0 %v518, 4
      %v1590 = vpop.permute.xlu0 %1589
      %1591 = vrot.lane.b32.xlu0 %v654, 4
      %v1592 = vpop.permute.xlu0 %1591
      %1593 = vrot.lane.b32.xlu0 %v790, 4
      %v1594 = vpop.permute.xlu0 %1593
      %1595 = vrot.lane.b32.xlu0 %v926, 4
      %v1596 = vpop.permute.xlu0 %1595
      %1597 = vrot.lane.b32.xlu0 %v1062, 4
      %v1598 = vpop.permute.xlu0 %1597
      %1599 = vrot.lane.b32.xlu0 %v1198, 4
      %v1600 = vpop.permute.xlu0 %1599
      %1601 = vrot.lane.b32.xlu0 %v1334, 4
      %v1602 = vpop.permute.xlu0 %1601
      %1603 = vrot.lane.b32.xlu0 %v1470, 4
      %v1604 = vpop.permute.xlu0 %1603
      %1605 = vrot.lane.b32.xlu0 %v519, 4
      %v1606 = vpop.permute.xlu0 %1605
      %1607 = vrot.lane.b32.xlu0 %v655, 4
      %v1608 = vpop.permute.xlu0 %1607
      %1609 = vrot.lane.b32.xlu0 %v791, 4
      %v1610 = vpop.permute.xlu0 %1609
      %1611 = vrot.lane.b32.xlu0 %v927, 4
      %v1612 = vpop.permute.xlu0 %1611
      %1613 = vrot.lane.b32.xlu0 %v1063, 4
      %v1614 = vpop.permute.xlu0 %1613
      %1615 = vrot.lane.b32.xlu0 %v1199, 4
      %v1616 = vpop.permute.xlu0 %1615
      %1617 = vrot.lane.b32.xlu0 %v1335, 4
      %v1618 = vpop.permute.xlu0 %1617
      %1619 = vrot.lane.b32.xlu0 %v1471, 4
      %v1620 = vpop.permute.xlu0 %1619
      %1678 = vrot.lane.b32.xlu0 0.0, 8
      %v1679 = vpop.permute.xlu0 %1678
      %1680 = vrot.lane.b32.xlu0 %v514, 8
      %v1681 = vpop.permute.xlu0 %1680
      %1682 = vrot.lane.b32.xlu0 %v650, 8
      %v1683 = vpop.permute.xlu0 %1682
      %1684 = vrot.lane.b32.xlu0 %v786, 8
      %v1685 = vpop.permute.xlu0 %1684
      %1686 = vrot.lane.b32.xlu0 %v922, 8
      %v1687 = vpop.permute.xlu0 %1686
      %1688 = vrot.lane.b32.xlu0 %v1058, 8
      %v1689 = vpop.permute.xlu0 %1688
      %1690 = vrot.lane.b32.xlu0 %v1194, 8
      %v1691 = vpop.permute.xlu0 %1690
      %1692 = vrot.lane.b32.xlu0 %v1330, 8
      %v1693 = vpop.permute.xlu0 %1692
      %1694 = vrot.lane.b32.xlu0 %v1466, 8
      %v1695 = vpop.permute.xlu0 %1694
      %1696 = vrot.lane.b32.xlu0 %v515, 8
      %v1697 = vpop.permute.xlu0 %1696
      %1698 = vrot.lane.b32.xlu0 %v651, 8
      %v1699 = vpop.permute.xlu0 %1698
      %1700 = vrot.lane.b32.xlu0 %v787, 8
      %v1701 = vpop.permute.xlu0 %1700
      %1702 = vrot.lane.b32.xlu0 %v923, 8
      %v1703 = vpop.permute.xlu0 %1702
      %1704 = vrot.lane.b32.xlu0 %v1059, 8
      %v1705 = vpop.permute.xlu0 %1704
      %1706 = vrot.lane.b32.xlu0 %v1195, 8
      %v1707 = vpop.permute.xlu0 %1706
      %1708 = vrot.lane.b32.xlu0 %v1331, 8
      %v1709 = vpop.permute.xlu0 %1708
      %1710 = vrot.lane.b32.xlu0 %v1467, 8
      %v1711 = vpop.permute.xlu0 %1710
      %1712 = vrot.lane.b32.xlu0 %v516, 8
      %v1713 = vpop.permute.xlu0 %1712
      %1714 = vrot.lane.b32.xlu0 %v652, 8
      %v1715 = vpop.permute.xlu0 %1714
      %1716 = vrot.lane.b32.xlu0 %v788, 8
      %v1717 = vpop.permute.xlu0 %1716
      %1718 = vrot.lane.b32.xlu0 %v924, 8
      %v1719 = vpop.permute.xlu0 %1718
      %1720 = vrot.lane.b32.xlu0 %v1060, 8
      %v1721 = vpop.permute.xlu0 %1720
      %1722 = vrot.lane.b32.xlu0 %v1196, 8
      %v1723 = vpop.permute.xlu0 %1722
      %1724 = vrot.lane.b32.xlu0 %v1332, 8
      %v1725 = vpop.permute.xlu0 %1724
      %1726 = vrot.lane.b32.xlu0 %v1468, 8
      %v1727 = vpop.permute.xlu0 %1726
      %1728 = vrot.lane.b32.xlu0 %v517, 8
      %v1729 = vpop.permute.xlu0 %1728
      %1730 = vrot.lane.b32.xlu0 %v653, 8
      %v1731 = vpop.permute.xlu0 %1730
      %1732 = vrot.lane.b32.xlu0 %v789, 8
      %v1733 = vpop.permute.xlu0 %1732
      %1734 = vrot.lane.b32.xlu0 %v925, 8
      %v1735 = vpop.permute.xlu0 %1734
      %1736 = vrot.lane.b32.xlu0 %v1061, 8
      %v1737 = vpop.permute.xlu0 %1736
      %1738 = vrot.lane.b32.xlu0 %v1197, 8
      %v1739 = vpop.permute.xlu0 %1738
      %1740 = vrot.lane.b32.xlu0 %v1333, 8
      %v1741 = vpop.permute.xlu0 %1740
      %1742 = vrot.lane.b32.xlu0 %v1469, 8
      %v1743 = vpop.permute.xlu0 %1742
      %1744 = vrot.lane.b32.xlu0 %v518, 8
      %v1745 = vpop.permute.xlu0 %1744
      %1746 = vrot.lane.b32.xlu0 %v654, 8
      %v1747 = vpop.permute.xlu0 %1746
      %1748 = vrot.lane.b32.xlu0 %v790, 8
      %v1749 = vpop.permute.xlu0 %1748
      %1750 = vrot.lane.b32.xlu0 %v926, 8
      %v1751 = vpop.permute.xlu0 %1750
      %1752 = vrot.lane.b32.xlu0 %v1062, 8
      %v1753 = vpop.permute.xlu0 %1752
      %1754 = vrot.lane.b32.xlu0 %v1198, 8
      %v1755 = vpop.permute.xlu0 %1754
      %1756 = vrot.lane.b32.xlu0 %v1334, 8
      %v1757 = vpop.permute.xlu0 %1756
      %1758 = vrot.lane.b32.xlu0 %v1470, 8
      %v1759 = vpop.permute.xlu0 %1758
      %1760 = vrot.lane.b32.xlu0 %v519, 8
      %v1761 = vpop.permute.xlu0 %1760
      %1762 = vrot.lane.b32.xlu0 %v655, 8
      %v1763 = vpop.permute.xlu0 %1762
      %1764 = vrot.lane.b32.xlu0 %v791, 8
      %v1765 = vpop.permute.xlu0 %1764
      %1766 = vrot.lane.b32.xlu0 %v927, 8
      %v1767 = vpop.permute.xlu0 %1766
      %1768 = vrot.lane.b32.xlu0 %v1063, 8
      %v1769 = vpop.permute.xlu0 %1768
      %1770 = vrot.lane.b32.xlu0 %v1199, 8
      %v1771 = vpop.permute.xlu0 %1770
      %1772 = vrot.lane.b32.xlu0 %v1335, 8
      %v1773 = vpop.permute.xlu0 %1772
      %1774 = vrot.lane.b32.xlu0 %v1471, 8
      %v1775 = vpop.permute.xlu0 %1774
      %1776 = vrot.lane.b32.xlu0 %v520, 8
      %v1777 = vpop.permute.xlu0 %1776
      %1778 = vrot.lane.b32.xlu0 %v656, 8
      %v1779 = vpop.permute.xlu0 %1778
      %1780 = vrot.lane.b32.xlu0 %v792, 8
      %v1781 = vpop.permute.xlu0 %1780
      %1782 = vrot.lane.b32.xlu0 %v928, 8
      %v1783 = vpop.permute.xlu0 %1782
      %1784 = vrot.lane.b32.xlu0 %v1064, 8
      %v1785 = vpop.permute.xlu0 %1784
      %1786 = vrot.lane.b32.xlu0 %v1200, 8
      %v1787 = vpop.permute.xlu0 %1786
      %1788 = vrot.lane.b32.xlu0 %v1336, 8
      %v1789 = vpop.permute.xlu0 %1788
      %1790 = vrot.lane.b32.xlu0 %v1472, 8
      %v1791 = vpop.permute.xlu0 %1790
      %1857 = vrot.lane.b32.xlu0 %v514, 12
      %v1858 = vpop.permute.xlu0 %1857
      %1859 = vrot.lane.b32.xlu0 %v650, 12
      %v1860 = vpop.permute.xlu0 %1859
      %1861 = vrot.lane.b32.xlu0 %v786, 12
      %v1862 = vpop.permute.xlu0 %1861
      %1863 = vrot.lane.b32.xlu0 %v922, 12
      %v1864 = vpop.permute.xlu0 %1863
      %1865 = vrot.lane.b32.xlu0 %v1058, 12
      %v1866 = vpop.permute.xlu0 %1865
      %1867 = vrot.lane.b32.xlu0 %v1194, 12
      %v1868 = vpop.permute.xlu0 %1867
      %1869 = vrot.lane.b32.xlu0 %v1330, 12
      %v1870 = vpop.permute.xlu0 %1869
      %1871 = vrot.lane.b32.xlu0 %v1466, 12
      %v1872 = vpop.permute.xlu0 %1871
      %1873 = vrot.lane.b32.xlu0 %v515, 12
      %v1874 = vpop.permute.xlu0 %1873
      %1875 = vrot.lane.b32.xlu0 %v651, 12
      %v1876 = vpop.permute.xlu0 %1875
      %1877 = vrot.lane.b32.xlu0 %v787, 12
      %v1878 = vpop.permute.xlu0 %1877
      %1879 = vrot.lane.b32.xlu0 %v923, 12
      %v1880 = vpop.permute.xlu0 %1879
      %1881 = vrot.lane.b32.xlu0 %v1059, 12
      %v1882 = vpop.permute.xlu0 %1881
      %1883 = vrot.lane.b32.xlu0 %v1195, 12
      %v1884 = vpop.permute.xlu0 %1883
      %1885 = vrot.lane.b32.xlu0 %v1331, 12
      %v1886 = vpop.permute.xlu0 %1885
      %1887 = vrot.lane.b32.xlu0 %v1467, 12
      %v1888 = vpop.permute.xlu0 %1887
      %1889 = vrot.lane.b32.xlu0 %v516, 12
      %v1890 = vpop.permute.xlu0 %1889
      %1891 = vrot.lane.b32.xlu0 %v652, 12
      %v1892 = vpop.permute.xlu0 %1891
      %1893 = vrot.lane.b32.xlu0 %v788, 12
      %v1894 = vpop.permute.xlu0 %1893
      %1895 = vrot.lane.b32.xlu0 %v924, 12
      %v1896 = vpop.permute.xlu0 %1895
      %1897 = vrot.lane.b32.xlu0 %v1060, 12
      %v1898 = vpop.permute.xlu0 %1897
      %1899 = vrot.lane.b32.xlu0 %v1196, 12
      %v1900 = vpop.permute.xlu0 %1899
      %1901 = vrot.lane.b32.xlu0 %v1332, 12
      %v1902 = vpop.permute.xlu0 %1901
      %1903 = vrot.lane.b32.xlu0 %v1468, 12
      %v1904 = vpop.permute.xlu0 %1903
      %1905 = vrot.lane.b32.xlu0 %v517, 12
      %v1906 = vpop.permute.xlu0 %1905
      %1907 = vrot.lane.b32.xlu0 %v653, 12
      %v1908 = vpop.permute.xlu0 %1907
      %1909 = vrot.lane.b32.xlu0 %v789, 12
      %v1910 = vpop.permute.xlu0 %1909
      %1911 = vrot.lane.b32.xlu0 %v925, 12
      %v1912 = vpop.permute.xlu0 %1911
      %1913 = vrot.lane.b32.xlu0 %v1061, 12
      %v1914 = vpop.permute.xlu0 %1913
      %1915 = vrot.lane.b32.xlu0 %v1197, 12
      %v1916 = vpop.permute.xlu0 %1915
      %1917 = vrot.lane.b32.xlu0 %v1333, 12
      %v1918 = vpop.permute.xlu0 %1917
      %1919 = vrot.lane.b32.xlu0 %v1469, 12
      %v1920 = vpop.permute.xlu0 %1919
      %1921 = vrot.lane.b32.xlu0 %v518, 12
      %v1922 = vpop.permute.xlu0 %1921
      %1923 = vrot.lane.b32.xlu0 %v654, 12
      %v1924 = vpop.permute.xlu0 %1923
      %1925 = vrot.lane.b32.xlu0 %v790, 12
      %v1926 = vpop.permute.xlu0 %1925
      %1927 = vrot.lane.b32.xlu0 %v926, 12
      %v1928 = vpop.permute.xlu0 %1927
      %1929 = vrot.lane.b32.xlu0 %v1062, 12
      %v1930 = vpop.permute.xlu0 %1929
      %1931 = vrot.lane.b32.xlu0 %v1198, 12
      %v1932 = vpop.permute.xlu0 %1931
      %1933 = vrot.lane.b32.xlu0 %v1334, 12
      %v1934 = vpop.permute.xlu0 %1933
      %1935 = vrot.lane.b32.xlu0 %v1470, 12
      %v1936 = vpop.permute.xlu0 %1935
      %1937 = vrot.lane.b32.xlu0 %v519, 12
      %v1938 = vpop.permute.xlu0 %1937
      %1939 = vrot.lane.b32.xlu0 %v655, 12
      %v1940 = vpop.permute.xlu0 %1939
      %1941 = vrot.lane.b32.xlu0 %v791, 12
      %v1942 = vpop.permute.xlu0 %1941
      %1943 = vrot.lane.b32.xlu0 %v927, 12
      %v1944 = vpop.permute.xlu0 %1943
      %1945 = vrot.lane.b32.xlu0 %v1063, 12
      %v1946 = vpop.permute.xlu0 %1945
      %1947 = vrot.lane.b32.xlu0 %v1199, 12
      %v1948 = vpop.permute.xlu0 %1947
      %1949 = vrot.lane.b32.xlu0 %v1335, 12
      %v1950 = vpop.permute.xlu0 %1949
      %1951 = vrot.lane.b32.xlu0 %v1471, 12
      %v1952 = vpop.permute.xlu0 %1951
      %1953 = vrot.lane.b32.xlu0 %v520, 12
      %v1954 = vpop.permute.xlu0 %1953
      %1955 = vrot.lane.b32.xlu0 %v656, 12
      %v1956 = vpop.permute.xlu0 %1955
      %1957 = vrot.lane.b32.xlu0 %v792, 12
      %v1958 = vpop.permute.xlu0 %1957
      %1959 = vrot.lane.b32.xlu0 %v928, 12
      %v1960 = vpop.permute.xlu0 %1959
      %1961 = vrot.lane.b32.xlu0 %v1064, 12
      %v1962 = vpop.permute.xlu0 %1961
      %1963 = vrot.lane.b32.xlu0 %v1200, 12
      %v1964 = vpop.permute.xlu0 %1963
      %1965 = vrot.lane.b32.xlu0 %v1336, 12
      %v1966 = vpop.permute.xlu0 %1965
      %1967 = vrot.lane.b32.xlu0 %v1472, 12
      %v1968 = vpop.permute.xlu0 %1967
      %1969 = vrot.lane.b32.xlu0 %v521, 12
      %v1970 = vpop.permute.xlu0 %1969
      %1971 = vrot.lane.b32.xlu0 %v657, 12
      %v1972 = vpop.permute.xlu0 %1971
      %1973 = vrot.lane.b32.xlu0 %v793, 12
      %v1974 = vpop.permute.xlu0 %1973
      %1975 = vrot.lane.b32.xlu0 %v929, 12
      %v1976 = vpop.permute.xlu0 %1975
      %1977 = vrot.lane.b32.xlu0 %v1065, 12
      %v1978 = vpop.permute.xlu0 %1977
      %1979 = vrot.lane.b32.xlu0 %v1201, 12
      %v1980 = vpop.permute.xlu0 %1979
      %1981 = vrot.lane.b32.xlu0 %v1337, 12
      %v1982 = vpop.permute.xlu0 %1981
      %1983 = vrot.lane.b32.xlu0 %v1473, 12
      %v1984 = vpop.permute.xlu0 %1983
      %2049 = vrot.lane.b32.xlu0 %v515, 16
      %v2050 = vpop.permute.xlu0 %2049
      %2051 = vrot.lane.b32.xlu0 %v651, 16
      %v2052 = vpop.permute.xlu0 %2051
      %2053 = vrot.lane.b32.xlu0 %v787, 16
      %v2054 = vpop.permute.xlu0 %2053
      %2055 = vrot.lane.b32.xlu0 %v923, 16
      %v2056 = vpop.permute.xlu0 %2055
      %2057 = vrot.lane.b32.xlu0 %v1059, 16
      %v2058 = vpop.permute.xlu0 %2057
      %2059 = vrot.lane.b32.xlu0 %v1195, 16
      %v2060 = vpop.permute.xlu0 %2059
      %2061 = vrot.lane.b32.xlu0 %v1331, 16
      %v2062 = vpop.permute.xlu0 %2061
      %2063 = vrot.lane.b32.xlu0 %v1467, 16
      %v2064 = vpop.permute.xlu0 %2063
      %2065 = vrot.lane.b32.xlu0 %v516, 16
      %v2066 = vpop.permute.xlu0 %2065
      %2067 = vrot.lane.b32.xlu0 %v652, 16
      %v2068 = vpop.permute.xlu0 %2067
      %2069 = vrot.lane.b32.xlu0 %v788, 16
      %v2070 = vpop.permute.xlu0 %2069
      %2071 = vrot.lane.b32.xlu0 %v924, 16
      %v2072 = vpop.permute.xlu0 %2071
      %2073 = vrot.lane.b32.xlu0 %v1060, 16
      %v2074 = vpop.permute.xlu0 %2073
      %2075 = vrot.lane.b32.xlu0 %v1196, 16
      %v2076 = vpop.permute.xlu0 %2075
      %2077 = vrot.lane.b32.xlu0 %v1332, 16
      %v2078 = vpop.permute.xlu0 %2077
      %2079 = vrot.lane.b32.xlu0 %v1468, 16
      %v2080 = vpop.permute.xlu0 %2079
      %2081 = vrot.lane.b32.xlu0 %v517, 16
      %v2082 = vpop.permute.xlu0 %2081
      %2083 = vrot.lane.b32.xlu0 %v653, 16
      %v2084 = vpop.permute.xlu0 %2083
      %2085 = vrot.lane.b32.xlu0 %v789, 16
      %v2086 = vpop.permute.xlu0 %2085
      %2087 = vrot.lane.b32.xlu0 %v925, 16
      %v2088 = vpop.permute.xlu0 %2087
      %2089 = vrot.lane.b32.xlu0 %v1061, 16
      %v2090 = vpop.permute.xlu0 %2089
      %2091 = vrot.lane.b32.xlu0 %v1197, 16
      %v2092 = vpop.permute.xlu0 %2091
      %2093 = vrot.lane.b32.xlu0 %v1333, 16
      %v2094 = vpop.permute.xlu0 %2093
      %2095 = vrot.lane.b32.xlu0 %v1469, 16
      %v2096 = vpop.permute.xlu0 %2095
      %2097 = vrot.lane.b32.xlu0 %v518, 16
      %v2098 = vpop.permute.xlu0 %2097
      %2099 = vrot.lane.b32.xlu0 %v654, 16
      %v2100 = vpop.permute.xlu0 %2099
      %2101 = vrot.lane.b32.xlu0 %v790, 16
      %v2102 = vpop.permute.xlu0 %2101
      %2103 = vrot.lane.b32.xlu0 %v926, 16
      %v2104 = vpop.permute.xlu0 %2103
      %2105 = vrot.lane.b32.xlu0 %v1062, 16
      %v2106 = vpop.permute.xlu0 %2105
      %2107 = vrot.lane.b32.xlu0 %v1198, 16
      %v2108 = vpop.permute.xlu0 %2107
      %2109 = vrot.lane.b32.xlu0 %v1334, 16
      %v2110 = vpop.permute.xlu0 %2109
      %2111 = vrot.lane.b32.xlu0 %v1470, 16
      %v2112 = vpop.permute.xlu0 %2111
      %2113 = vrot.lane.b32.xlu0 %v519, 16
      %v2114 = vpop.permute.xlu0 %2113
      %2115 = vrot.lane.b32.xlu0 %v655, 16
      %v2116 = vpop.permute.xlu0 %2115
      %2117 = vrot.lane.b32.xlu0 %v791, 16
      %v2118 = vpop.permute.xlu0 %2117
      %2119 = vrot.lane.b32.xlu0 %v927, 16
      %v2120 = vpop.permute.xlu0 %2119
      %2121 = vrot.lane.b32.xlu0 %v1063, 16
      %v2122 = vpop.permute.xlu0 %2121
      %2123 = vrot.lane.b32.xlu0 %v1199, 16
      %v2124 = vpop.permute.xlu0 %2123
      %2125 = vrot.lane.b32.xlu0 %v1335, 16
      %v2126 = vpop.permute.xlu0 %2125
      %2127 = vrot.lane.b32.xlu0 %v1471, 16
      %v2128 = vpop.permute.xlu0 %2127
      %2129 = vrot.lane.b32.xlu0 %v520, 16
      %v2130 = vpop.permute.xlu0 %2129
      %2131 = vrot.lane.b32.xlu0 %v656, 16
      %v2132 = vpop.permute.xlu0 %2131
      %2133 = vrot.lane.b32.xlu0 %v792, 16
      %v2134 = vpop.permute.xlu0 %2133
      %2135 = vrot.lane.b32.xlu0 %v928, 16
      %v2136 = vpop.permute.xlu0 %2135
      %2137 = vrot.lane.b32.xlu0 %v1064, 16
      %v2138 = vpop.permute.xlu0 %2137
      %2139 = vrot.lane.b32.xlu0 %v1200, 16
      %v2140 = vpop.permute.xlu0 %2139
      %2141 = vrot.lane.b32.xlu0 %v1336, 16
      %v2142 = vpop.permute.xlu0 %2141
      %2143 = vrot.lane.b32.xlu0 %v1472, 16
      %v2144 = vpop.permute.xlu0 %2143
      %2145 = vrot.lane.b32.xlu0 %v521, 16
      %v2146 = vpop.permute.xlu0 %2145
      %2147 = vrot.lane.b32.xlu0 %v657, 16
      %v2148 = vpop.permute.xlu0 %2147
      %2149 = vrot.lane.b32.xlu0 %v793, 16
      %v2150 = vpop.permute.xlu0 %2149
      %2151 = vrot.lane.b32.xlu0 %v929, 16
      %v2152 = vpop.permute.xlu0 %2151
      %2153 = vrot.lane.b32.xlu0 %v1065, 16
      %v2154 = vpop.permute.xlu0 %2153
      %2155 = vrot.lane.b32.xlu0 %v1201, 16
      %v2156 = vpop.permute.xlu0 %2155
      %2157 = vrot.lane.b32.xlu0 %v1337, 16
      %v2158 = vpop.permute.xlu0 %2157
      %2159 = vrot.lane.b32.xlu0 %v1473, 16
      %v2160 = vpop.permute.xlu0 %2159
      %2161 = vrot.lane.b32.xlu0 0.0, 16
      %v2162 = vpop.permute.xlu0 %2161
      %2220 = vrot.lane.b32.xlu0 %v516, 20
      %v2221 = vpop.permute.xlu0 %2220
      %2222 = vrot.lane.b32.xlu0 %v652, 20
      %v2223 = vpop.permute.xlu0 %2222
      %2224 = vrot.lane.b32.xlu0 %v788, 20
      %v2225 = vpop.permute.xlu0 %2224
      %2226 = vrot.lane.b32.xlu0 %v924, 20
      %v2227 = vpop.permute.xlu0 %2226
      %2228 = vrot.lane.b32.xlu0 %v1060, 20
      %v2229 = vpop.permute.xlu0 %2228
      %2230 = vrot.lane.b32.xlu0 %v1196, 20
      %v2231 = vpop.permute.xlu0 %2230
      %2232 = vrot.lane.b32.xlu0 %v1332, 20
      %v2233 = vpop.permute.xlu0 %2232
      %2234 = vrot.lane.b32.xlu0 %v1468, 20
      %v2235 = vpop.permute.xlu0 %2234
      %2236 = vrot.lane.b32.xlu0 %v517, 20
      %v2237 = vpop.permute.xlu0 %2236
      %2238 = vrot.lane.b32.xlu0 %v653, 20
      %v2239 = vpop.permute.xlu0 %2238
      %2240 = vrot.lane.b32.xlu0 %v789, 20
      %v2241 = vpop.permute.xlu0 %2240
      %2242 = vrot.lane.b32.xlu0 %v925, 20
      %v2243 = vpop.permute.xlu0 %2242
      %2244 = vrot.lane.b32.xlu0 %v1061, 20
      %v2245 = vpop.permute.xlu0 %2244
      %2246 = vrot.lane.b32.xlu0 %v1197, 20
      %v2247 = vpop.permute.xlu0 %2246
      %2248 = vrot.lane.b32.xlu0 %v1333, 20
      %v2249 = vpop.permute.xlu0 %2248
      %2250 = vrot.lane.b32.xlu0 %v1469, 20
      %v2251 = vpop.permute.xlu0 %2250
      %2252 = vrot.lane.b32.xlu0 %v518, 20
      %v2253 = vpop.permute.xlu0 %2252
      %2254 = vrot.lane.b32.xlu0 %v654, 20
      %v2255 = vpop.permute.xlu0 %2254
      %2256 = vrot.lane.b32.xlu0 %v790, 20
      %v2257 = vpop.permute.xlu0 %2256
      %2258 = vrot.lane.b32.xlu0 %v926, 20
      %v2259 = vpop.permute.xlu0 %2258
      %2260 = vrot.lane.b32.xlu0 %v1062, 20
      %v2261 = vpop.permute.xlu0 %2260
      %2262 = vrot.lane.b32.xlu0 %v1198, 20
      %v2263 = vpop.permute.xlu0 %2262
      %2264 = vrot.lane.b32.xlu0 %v1334, 20
      %v2265 = vpop.permute.xlu0 %2264
      %2266 = vrot.lane.b32.xlu0 %v1470, 20
      %v2267 = vpop.permute.xlu0 %2266
      %2268 = vrot.lane.b32.xlu0 %v519, 20
      %v2269 = vpop.permute.xlu0 %2268
      %2270 = vrot.lane.b32.xlu0 %v655, 20
      %v2271 = vpop.permute.xlu0 %2270
      %2272 = vrot.lane.b32.xlu0 %v791, 20
      %v2273 = vpop.permute.xlu0 %2272
      %2274 = vrot.lane.b32.xlu0 %v927, 20
      %v2275 = vpop.permute.xlu0 %2274
      %2276 = vrot.lane.b32.xlu0 %v1063, 20
      %v2277 = vpop.permute.xlu0 %2276
      %2278 = vrot.lane.b32.xlu0 %v1199, 20
      %v2279 = vpop.permute.xlu0 %2278
      %2280 = vrot.lane.b32.xlu0 %v1335, 20
      %v2281 = vpop.permute.xlu0 %2280
      %2282 = vrot.lane.b32.xlu0 %v1471, 20
      %v2283 = vpop.permute.xlu0 %2282
      %2284 = vrot.lane.b32.xlu0 %v520, 20
      %v2285 = vpop.permute.xlu0 %2284
      %2286 = vrot.lane.b32.xlu0 %v656, 20
      %v2287 = vpop.permute.xlu0 %2286
      %2288 = vrot.lane.b32.xlu0 %v792, 20
      %v2289 = vpop.permute.xlu0 %2288
      %2290 = vrot.lane.b32.xlu0 %v928, 20
      %v2291 = vpop.permute.xlu0 %2290
      %2292 = vrot.lane.b32.xlu0 %v1064, 20
      %v2293 = vpop.permute.xlu0 %2292
      %2294 = vrot.lane.b32.xlu0 %v1200, 20
      %v2295 = vpop.permute.xlu0 %2294
      %2296 = vrot.lane.b32.xlu0 %v1336, 20
      %v2297 = vpop.permute.xlu0 %2296
      %2298 = vrot.lane.b32.xlu0 %v1472, 20
      %v2299 = vpop.permute.xlu0 %2298
      %2300 = vrot.lane.b32.xlu0 %v521, 20
      %v2301 = vpop.permute.xlu0 %2300
      %2302 = vrot.lane.b32.xlu0 %v657, 20
      %v2303 = vpop.permute.xlu0 %2302
      %2304 = vrot.lane.b32.xlu0 %v793, 20
      %v2305 = vpop.permute.xlu0 %2304
      %2306 = vrot.lane.b32.xlu0 %v929, 20
      %v2307 = vpop.permute.xlu0 %2306
      %2308 = vrot.lane.b32.xlu0 %v1065, 20
      %v2309 = vpop.permute.xlu0 %2308
      %2310 = vrot.lane.b32.xlu0 %v1201, 20
      %v2311 = vpop.permute.xlu0 %2310
      %2312 = vrot.lane.b32.xlu0 %v1337, 20
      %v2313 = vpop.permute.xlu0 %2312
      %2314 = vrot.lane.b32.xlu0 %v1473, 20
      %v2315 = vpop.permute.xlu0 %2314
      %2316 = vrot.lane.b32.xlu0 0.0, 20
      %v2317 = vpop.permute.xlu0 %2316
      %2367 = vrot.lane.b32.xlu0 %v518, 24
      %v2368 = vpop.permute.xlu0 %2367
      %2369 = vrot.lane.b32.xlu0 %v654, 24
      %v2370 = vpop.permute.xlu0 %2369
      %2371 = vrot.lane.b32.xlu0 %v790, 24
      %v2372 = vpop.permute.xlu0 %2371
      %2373 = vrot.lane.b32.xlu0 %v926, 24
      %v2374 = vpop.permute.xlu0 %2373
      %2375 = vrot.lane.b32.xlu0 %v1062, 24
      %v2376 = vpop.permute.xlu0 %2375
      %2377 = vrot.lane.b32.xlu0 %v1198, 24
      %v2378 = vpop.permute.xlu0 %2377
      %2379 = vrot.lane.b32.xlu0 %v1334, 24
      %v2380 = vpop.permute.xlu0 %2379
      %2381 = vrot.lane.b32.xlu0 %v1470, 24
      %v2382 = vpop.permute.xlu0 %2381
      %2383 = vrot.lane.b32.xlu0 %v519, 24
      %v2384 = vpop.permute.xlu0 %2383
      %2385 = vrot.lane.b32.xlu0 %v655, 24
      %v2386 = vpop.permute.xlu0 %2385
      %2387 = vrot.lane.b32.xlu0 %v791, 24
      %v2388 = vpop.permute.xlu0 %2387
      %2389 = vrot.lane.b32.xlu0 %v927, 24
      %v2390 = vpop.permute.xlu0 %2389
      %2391 = vrot.lane.b32.xlu0 %v1063, 24
      %v2392 = vpop.permute.xlu0 %2391
      %2393 = vrot.lane.b32.xlu0 %v1199, 24
      %v2394 = vpop.permute.xlu0 %2393
      %2395 = vrot.lane.b32.xlu0 %v1335, 24
      %v2396 = vpop.permute.xlu0 %2395
      %2397 = vrot.lane.b32.xlu0 %v1471, 24
      %v2398 = vpop.permute.xlu0 %2397
      %2399 = vrot.lane.b32.xlu0 %v520, 24
      %v2400 = vpop.permute.xlu0 %2399
      %2401 = vrot.lane.b32.xlu0 %v656, 24
      %v2402 = vpop.permute.xlu0 %2401
      %2403 = vrot.lane.b32.xlu0 %v792, 24
      %v2404 = vpop.permute.xlu0 %2403
      %2405 = vrot.lane.b32.xlu0 %v928, 24
      %v2406 = vpop.permute.xlu0 %2405
      %2407 = vrot.lane.b32.xlu0 %v1064, 24
      %v2408 = vpop.permute.xlu0 %2407
      %2409 = vrot.lane.b32.xlu0 %v1200, 24
      %v2410 = vpop.permute.xlu0 %2409
      %2411 = vrot.lane.b32.xlu0 %v1336, 24
      %v2412 = vpop.permute.xlu0 %2411
      %2413 = vrot.lane.b32.xlu0 %v1472, 24
      %v2414 = vpop.permute.xlu0 %2413
      %2415 = vrot.lane.b32.xlu0 %v521, 24
      %v2416 = vpop.permute.xlu0 %2415
      %2417 = vrot.lane.b32.xlu0 %v657, 24
      %v2418 = vpop.permute.xlu0 %2417
      %2419 = vrot.lane.b32.xlu0 %v793, 24
      %v2420 = vpop.permute.xlu0 %2419
      %2421 = vrot.lane.b32.xlu0 %v929, 24
      %v2422 = vpop.permute.xlu0 %2421
      %2423 = vrot.lane.b32.xlu0 %v1065, 24
      %v2424 = vpop.permute.xlu0 %2423
      %2425 = vrot.lane.b32.xlu0 %v1201, 24
      %v2426 = vpop.permute.xlu0 %2425
      %2427 = vrot.lane.b32.xlu0 %v1337, 24
      %v2428 = vpop.permute.xlu0 %2427
      %2429 = vrot.lane.b32.xlu0 %v1473, 24
      %v2430 = vpop.permute.xlu0 %2429
      %2431 = vrot.lane.b32.xlu0 0.0, 24
      %v2432 = vpop.permute.xlu0 %2431
      %vm2466 = vcmask 31744
      %v2467 = vsel %vm2466, 0.0, %v1524
      %v2468 = vsel %vm2466, 0.0, %v1526
      %v2469 = vsel %vm2466, 0.0, %v1528
      %v2470 = vsel %vm2466, 0.0, %v1530
      %v2471 = vsel %vm2466, 0.0, %v1532
      %v2472 = vsel %vm2466, 0.0, %v1534
      %v2473 = vsel %vm2466, 0.0, %v1536
      %v2474 = vsel %vm2466, 0.0, %v1538
      %v2475 = vsel %vm2466, 0.0, %v1540
      %v2476 = vsel %vm2466, 0.0, %v1542
      %v2477 = vsel %vm2466, 0.0, %v1544
      %v2478 = vsel %vm2466, 0.0, %v1546
      %v2479 = vsel %vm2466, 0.0, %v1548
      %v2480 = vsel %vm2466, 0.0, %v1550
      %v2481 = vsel %vm2466, 0.0, %v1552
      %v2482 = vsel %vm2466, 0.0, %v1554
      %v2483 = vsel %vm2466, 0.0, %v1556
      %v2484 = vsel %vm2466, %v514, %v1558
      %v2485 = vsel %vm2466, %v650, %v1560
      %v2486 = vsel %vm2466, %v786, %v1562
      %v2487 = vsel %vm2466, %v922, %v1564
      %v2488 = vsel %vm2466, %v1058, %v1566
      %v2489 = vsel %vm2466, %v1194, %v1568
      %v2490 = vsel %vm2466, %v1330, %v1570
      %v2491 = vsel %vm2466, %v1466, %v1572
      %v2492 = vsel %vm2466, %v515, %v1574
      %v2493 = vsel %vm2466, %v651, %v1576
      %v2494 = vsel %vm2466, %v787, %v1578
      %v2495 = vsel %vm2466, %v923, %v1580
      %v2496 = vsel %vm2466, %v1059, %v1582
      %v2497 = vsel %vm2466, %v1195, %v1584
      %v2498 = vsel %vm2466, %v1331, %v1586
      %v2499 = vsel %vm2466, %v1467, %v1588
      %v2500 = vsel %vm2466, %v516, %v1590
      %v2501 = vsel %vm2466, %v652, %v1592
      %v2502 = vsel %vm2466, %v788, %v1594
      %v2503 = vsel %vm2466, %v924, %v1596
      %v2504 = vsel %vm2466, %v1060, %v1598
      %v2505 = vsel %vm2466, %v1196, %v1600
      %v2506 = vsel %vm2466, %v1332, %v1602
      %v2507 = vsel %vm2466, %v1468, %v1604
      %v2508 = vsel %vm2466, %v517, %v1606
      %v2509 = vsel %vm2466, %v653, %v1608
      %v2510 = vsel %vm2466, %v789, %v1610
      %v2511 = vsel %vm2466, %v925, %v1612
      %v2512 = vsel %vm2466, %v1061, %v1614
      %v2513 = vsel %vm2466, %v1197, %v1616
      %v2514 = vsel %vm2466, %v1333, %v1618
      %v2515 = vsel %vm2466, %v1469, %v1620
      %vm2516 = vcmask 64512
      %v2517 = vsel %vm2516, %v2467, %v1679
      %v2518 = vsel %vm2516, %v2467, %v1681
      %v2519 = vsel %vm2516, %v2467, %v1683
      %v2520 = vsel %vm2516, %v2467, %v1685
      %v2521 = vsel %vm2516, %v2467, %v1687
      %v2522 = vsel %vm2516, %v2467, %v1689
      %v2523 = vsel %vm2516, %v2467, %v1691
      %v2524 = vsel %vm2516, %v2467, %v1693
      %v2525 = vsel %vm2516, %v2467, %v1695
      %v2526 = vsel %vm2516, %v2468, %v1697
      %v2527 = vsel %vm2516, %v2469, %v1699
      %v2528 = vsel %vm2516, %v2470, %v1701
      %v2529 = vsel %vm2516, %v2471, %v1703
      %v2530 = vsel %vm2516, %v2472, %v1705
      %v2531 = vsel %vm2516, %v2473, %v1707
      %v2532 = vsel %vm2516, %v2474, %v1709
      %v2533 = vsel %vm2516, %v2475, %v1711
      %v2534 = vsel %vm2516, %v2476, %v1713
      %v2535 = vsel %vm2516, %v2477, %v1715
      %v2536 = vsel %vm2516, %v2478, %v1717
      %v2537 = vsel %vm2516, %v2479, %v1719
      %v2538 = vsel %vm2516, %v2480, %v1721
      %v2539 = vsel %vm2516, %v2481, %v1723
      %v2540 = vsel %vm2516, %v2482, %v1725
      %v2541 = vsel %vm2516, %v2483, %v1727
      %v2542 = vsel %vm2516, %v2484, %v1729
      %v2543 = vsel %vm2516, %v2485, %v1731
      %v2544 = vsel %vm2516, %v2486, %v1733
      %v2545 = vsel %vm2516, %v2487, %v1735
      %v2546 = vsel %vm2516, %v2488, %v1737
      %v2547 = vsel %vm2516, %v2489, %v1739
      %v2548 = vsel %vm2516, %v2490, %v1741
      %v2549 = vsel %vm2516, %v2491, %v1743
      %v2550 = vsel %vm2516, %v2492, %v1745
      %v2551 = vsel %vm2516, %v2493, %v1747
      %v2552 = vsel %vm2516, %v2494, %v1749
      %v2553 = vsel %vm2516, %v2495, %v1751
      %v2554 = vsel %vm2516, %v2496, %v1753
      %v2555 = vsel %vm2516, %v2497, %v1755
      %v2556 = vsel %vm2516, %v2498, %v1757
      %v2557 = vsel %vm2516, %v2499, %v1759
      %v2558 = vsel %vm2516, %v2500, %v1761
      %v2559 = vsel %vm2516, %v2501, %v1763
      %v2560 = vsel %vm2516, %v2502, %v1765
      %v2561 = vsel %vm2516, %v2503, %v1767
      %v2562 = vsel %vm2516, %v2504, %v1769
      %v2563 = vsel %vm2516, %v2505, %v1771
      %v2564 = vsel %vm2516, %v2506, %v1773
      %v2565 = vsel %vm2516, %v2507, %v1775
      %v2566 = vsel %vm2516, %v2508, %v1777
      %v2567 = vsel %vm2516, %v2509, %v1779
      %v2568 = vsel %vm2516, %v2510, %v1781
      %v2569 = vsel %vm2516, %v2511, %v1783
      %v2570 = vsel %vm2516, %v2512, %v1785
      %v2571 = vsel %vm2516, %v2513, %v1787
      %v2572 = vsel %vm2516, %v2514, %v1789
      %v2573 = vsel %vm2516, %v2515, %v1791
      %vm2574 = vcmask 97280
      %v2575 = vsel %vm2574, %v2517, %v1858
      %v2576 = vsel %vm2574, %v2517, %v1860
      %v2577 = vsel %vm2574, %v2517, %v1862
      %v2578 = vsel %vm2574, %v2517, %v1864
      %v2579 = vsel %vm2574, %v2517, %v1866
      %v2580 = vsel %vm2574, %v2517, %v1868
      %v2581 = vsel %vm2574, %v2517, %v1870
      %v2582 = vsel %vm2574, %v2517, %v1872
      %v2583 = vsel %vm2574, %v2518, %v1874
      %v2584 = vsel %vm2574, %v2519, %v1876
      %v2585 = vsel %vm2574, %v2520, %v1878
      %v2586 = vsel %vm2574, %v2521, %v1880
      %v2587 = vsel %vm2574, %v2522, %v1882
      %v2588 = vsel %vm2574, %v2523, %v1884
      %v2589 = vsel %vm2574, %v2524, %v1886
      %v2590 = vsel %vm2574, %v2525, %v1888
      %v2591 = vsel %vm2574, %v2526, %v1890
      %v2592 = vsel %vm2574, %v2527, %v1892
      %v2593 = vsel %vm2574, %v2528, %v1894
      %v2594 = vsel %vm2574, %v2529, %v1896
      %v2595 = vsel %vm2574, %v2530, %v1898
      %v2596 = vsel %vm2574, %v2531, %v1900
      %v2597 = vsel %vm2574, %v2532, %v1902
      %v2598 = vsel %vm2574, %v2533, %v1904
      %v2599 = vsel %vm2574, %v2534, %v1906
      %v2600 = vsel %vm2574, %v2535, %v1908
      %v2601 = vsel %vm2574, %v2536, %v1910
      %v2602 = vsel %vm2574, %v2537, %v1912
      %v2603 = vsel %vm2574, %v2538, %v1914
      %v2604 = vsel %vm2574, %v2539, %v1916
      %v2605 = vsel %vm2574, %v2540, %v1918
      %v2606 = vsel %vm2574, %v2541, %v1920
      %v2607 = vsel %vm2574, %v2542, %v1922
      %v2608 = vsel %vm2574, %v2543, %v1924
      %v2609 = vsel %vm2574, %v2544, %v1926
      %v2610 = vsel %vm2574, %v2545, %v1928
      %v2611 = vsel %vm2574, %v2546, %v1930
      %v2612 = vsel %vm2574, %v2547, %v1932
      %v2613 = vsel %vm2574, %v2548, %v1934
      %v2614 = vsel %vm2574, %v2549, %v1936
      %v2615 = vsel %vm2574, %v2550, %v1938
      %v2616 = vsel %vm2574, %v2551, %v1940
      %v2617 = vsel %vm2574, %v2552, %v1942
      %v2618 = vsel %vm2574, %v2553, %v1944
      %v2619 = vsel %vm2574, %v2554, %v1946
      %v2620 = vsel %vm2574, %v2555, %v1948
      %v2621 = vsel %vm2574, %v2556, %v1950
      %v2622 = vsel %vm2574, %v2557, %v1952
      %v2623 = vsel %vm2574, %v2558, %v1954
      %v2624 = vsel %vm2574, %v2559, %v1956
      %v2625 = vsel %vm2574, %v2560, %v1958
      %v2626 = vsel %vm2574, %v2561, %v1960
      %v2627 = vsel %vm2574, %v2562, %v1962
      %v2628 = vsel %vm2574, %v2563, %v1964
      %v2629 = vsel %vm2574, %v2564, %v1966
      %v2630 = vsel %vm2574, %v2565, %v1968
      %v2631 = vsel %vm2574, %v2566, %v1970
      %v2632 = vsel %vm2574, %v2567, %v1972
      %v2633 = vsel %vm2574, %v2568, %v1974
      %v2634 = vsel %vm2574, %v2569, %v1976
      %v2635 = vsel %vm2574, %v2570, %v1978
      %v2636 = vsel %vm2574, %v2571, %v1980
      %v2637 = vsel %vm2574, %v2572, %v1982
      %v2638 = vsel %vm2574, %v2573, %v1984
      %vm2639 = vcmask 130048
      %v2640 = vsel %vm2639, %v2575, %v2050
      %v2641 = vsel %vm2639, %v2576, %v2052
      %v2642 = vsel %vm2639, %v2577, %v2054
      %v2643 = vsel %vm2639, %v2578, %v2056
      %v2644 = vsel %vm2639, %v2579, %v2058
      %v2645 = vsel %vm2639, %v2580, %v2060
      %v2646 = vsel %vm2639, %v2581, %v2062
      %v2647 = vsel %vm2639, %v2582, %v2064
      %v2648 = vsel %vm2639, %v2583, %v2066
      %v2649 = vsel %vm2639, %v2584, %v2068
      %v2650 = vsel %vm2639, %v2585, %v2070
      %v2651 = vsel %vm2639, %v2586, %v2072
      %v2652 = vsel %vm2639, %v2587, %v2074
      %v2653 = vsel %vm2639, %v2588, %v2076
      %v2654 = vsel %vm2639, %v2589, %v2078
      %v2655 = vsel %vm2639, %v2590, %v2080
      %v2656 = vsel %vm2639, %v2591, %v2082
      %v2657 = vsel %vm2639, %v2592, %v2084
      %v2658 = vsel %vm2639, %v2593, %v2086
      %v2659 = vsel %vm2639, %v2594, %v2088
      %v2660 = vsel %vm2639, %v2595, %v2090
      %v2661 = vsel %vm2639, %v2596, %v2092
      %v2662 = vsel %vm2639, %v2597, %v2094
      %v2663 = vsel %vm2639, %v2598, %v2096
      %v2664 = vsel %vm2639, %v2599, %v2098
      %v2665 = vsel %vm2639, %v2600, %v2100
      %v2666 = vsel %vm2639, %v2601, %v2102
      %v2667 = vsel %vm2639, %v2602, %v2104
      %v2668 = vsel %vm2639, %v2603, %v2106
      %v2669 = vsel %vm2639, %v2604, %v2108
      %v2670 = vsel %vm2639, %v2605, %v2110
      %v2671 = vsel %vm2639, %v2606, %v2112
      %v2672 = vsel %vm2639, %v2607, %v2114
      %v2673 = vsel %vm2639, %v2608, %v2116
      %v2674 = vsel %vm2639, %v2609, %v2118
      %v2675 = vsel %vm2639, %v2610, %v2120
      %v2676 = vsel %vm2639, %v2611, %v2122
      %v2677 = vsel %vm2639, %v2612, %v2124
      %v2678 = vsel %vm2639, %v2613, %v2126
      %v2679 = vsel %vm2639, %v2614, %v2128
      %v2680 = vsel %vm2639, %v2615, %v2130
      %v2681 = vsel %vm2639, %v2616, %v2132
      %v2682 = vsel %vm2639, %v2617, %v2134
      %v2683 = vsel %vm2639, %v2618, %v2136
      %v2684 = vsel %vm2639, %v2619, %v2138
      %v2685 = vsel %vm2639, %v2620, %v2140
      %v2686 = vsel %vm2639, %v2621, %v2142
      %v2687 = vsel %vm2639, %v2622, %v2144
      %v2688 = vsel %vm2639, %v2623, %v2146
      %v2689 = vsel %vm2639, %v2624, %v2148
      %v2690 = vsel %vm2639, %v2625, %v2150
      %v2691 = vsel %vm2639, %v2626, %v2152
      %v2692 = vsel %vm2639, %v2627, %v2154
      %v2693 = vsel %vm2639, %v2628, %v2156
      %v2694 = vsel %vm2639, %v2629, %v2158
      %v2695 = vsel %vm2639, %v2630, %v2160
      %v2696 = vsel %vm2639, %v2631, %v2162
      %v2697 = vsel %vm2639, %v2632, %v2162
      %v2698 = vsel %vm2639, %v2633, %v2162
      %v2699 = vsel %vm2639, %v2634, %v2162
      %v2700 = vsel %vm2639, %v2635, %v2162
      %v2701 = vsel %vm2639, %v2636, %v2162
      %v2702 = vsel %vm2639, %v2637, %v2162
      %v2703 = vsel %vm2639, %v2638, %v2162
      %vm2704 = vcmask 162816
      %v2705 = vsel %vm2704, %v2640, %v2221
      %v2706 = vsel %vm2704, %v2641, %v2223
      %v2707 = vsel %vm2704, %v2642, %v2225
      %v2708 = vsel %vm2704, %v2643, %v2227
      %v2709 = vsel %vm2704, %v2644, %v2229
      %v2710 = vsel %vm2704, %v2645, %v2231
      %v2711 = vsel %vm2704, %v2646, %v2233
      %v2712 = vsel %vm2704, %v2647, %v2235
      %v2713 = vsel %vm2704, %v2648, %v2237
      %v2714 = vsel %vm2704, %v2649, %v2239
      %v2715 = vsel %vm2704, %v2650, %v2241
      %v2716 = vsel %vm2704, %v2651, %v2243
      %v2717 = vsel %vm2704, %v2652, %v2245
      %v2718 = vsel %vm2704, %v2653, %v2247
      %v2719 = vsel %vm2704, %v2654, %v2249
      %v2720 = vsel %vm2704, %v2655, %v2251
      %v2721 = vsel %vm2704, %v2656, %v2253
      %v2722 = vsel %vm2704, %v2657, %v2255
      %v2723 = vsel %vm2704, %v2658, %v2257
      %v2724 = vsel %vm2704, %v2659, %v2259
      %v2725 = vsel %vm2704, %v2660, %v2261
      %v2726 = vsel %vm2704, %v2661, %v2263
      %v2727 = vsel %vm2704, %v2662, %v2265
      %v2728 = vsel %vm2704, %v2663, %v2267
      %v2729 = vsel %vm2704, %v2664, %v2269
      %v2730 = vsel %vm2704, %v2665, %v2271
      %v2731 = vsel %vm2704, %v2666, %v2273
      %v2732 = vsel %vm2704, %v2667, %v2275
      %v2733 = vsel %vm2704, %v2668, %v2277
      %v2734 = vsel %vm2704, %v2669, %v2279
      %v2735 = vsel %vm2704, %v2670, %v2281
      %v2736 = vsel %vm2704, %v2671, %v2283
      %v2737 = vsel %vm2704, %v2672, %v2285
      %v2738 = vsel %vm2704, %v2673, %v2287
      %v2739 = vsel %vm2704, %v2674, %v2289
      %v2740 = vsel %vm2704, %v2675, %v2291
      %v2741 = vsel %vm2704, %v2676, %v2293
      %v2742 = vsel %vm2704, %v2677, %v2295
      %v2743 = vsel %vm2704, %v2678, %v2297
      %v2744 = vsel %vm2704, %v2679, %v2299
      %v2745 = vsel %vm2704, %v2680, %v2301
      %v2746 = vsel %vm2704, %v2681, %v2303
      %v2747 = vsel %vm2704, %v2682, %v2305
      %v2748 = vsel %vm2704, %v2683, %v2307
      %v2749 = vsel %vm2704, %v2684, %v2309
      %v2750 = vsel %vm2704, %v2685, %v2311
      %v2751 = vsel %vm2704, %v2686, %v2313
      %v2752 = vsel %vm2704, %v2687, %v2315
      %v2753 = vsel %vm2704, %v2688, %v2317
      %v2754 = vsel %vm2704, %v2689, %v2317
      %v2755 = vsel %vm2704, %v2690, %v2317
      %v2756 = vsel %vm2704, %v2691, %v2317
      %v2757 = vsel %vm2704, %v2692, %v2317
      %v2758 = vsel %vm2704, %v2693, %v2317
      %v2759 = vsel %vm2704, %v2694, %v2317
      %v2760 = vsel %vm2704, %v2695, %v2317
      %v2761 = vsel %vm2704, %v2696, %v2317
      %v2762 = vsel %vm2704, %v2697, %v2317
      %v2763 = vsel %vm2704, %v2698, %v2317
      %v2764 = vsel %vm2704, %v2699, %v2317
      %v2765 = vsel %vm2704, %v2700, %v2317
      %v2766 = vsel %vm2704, %v2701, %v2317
      %v2767 = vsel %vm2704, %v2702, %v2317
      %v2768 = vsel %vm2704, %v2703, %v2317
      %vm2769 = vcmask 195584
      %v2770 = vsel %vm2769, %v2705, %v2368
      %v2771 = vsel %vm2769, %v2706, %v2370
      %v2772 = vsel %vm2769, %v2707, %v2372
      %v2773 = vsel %vm2769, %v2708, %v2374
      %v2774 = vsel %vm2769, %v2709, %v2376
      %v2775 = vsel %vm2769, %v2710, %v2378
      %v2776 = vsel %vm2769, %v2711, %v2380
      %v2777 = vsel %vm2769, %v2712, %v2382
      %v2778 = vsel %vm2769, %v2713, %v2384
      %v2779 = vsel %vm2769, %v2714, %v2386
      %v2780 = vsel %vm2769, %v2715, %v2388
      %v2781 = vsel %vm2769, %v2716, %v2390
      %v2782 = vsel %vm2769, %v2717, %v2392
      %v2783 = vsel %vm2769, %v2718, %v2394
      %v2784 = vsel %vm2769, %v2719, %v2396
      %v2785 = vsel %vm2769, %v2720, %v2398
      %v2786 = vsel %vm2769, %v2721, %v2400
      %v2787 = vsel %vm2769, %v2722, %v2402
      %v2788 = vsel %vm2769, %v2723, %v2404
      %v2789 = vsel %vm2769, %v2724, %v2406
      %v2790 = vsel %vm2769, %v2725, %v2408
      %v2791 = vsel %vm2769, %v2726, %v2410
      %v2792 = vsel %vm2769, %v2727, %v2412
      %v2793 = vsel %vm2769, %v2728, %v2414
      %v2794 = vsel %vm2769, %v2729, %v2416
      %v2795 = vsel %vm2769, %v2730, %v2418
      %v2796 = vsel %vm2769, %v2731, %v2420
      %v2797 = vsel %vm2769, %v2732, %v2422
      %v2798 = vsel %vm2769, %v2733, %v2424
      %v2799 = vsel %vm2769, %v2734, %v2426
      %v2800 = vsel %vm2769, %v2735, %v2428
      %v2801 = vsel %vm2769, %v2736, %v2430
      %v2802 = vsel %vm2769, %v2737, %v2432
      %v2803 = vsel %vm2769, %v2738, %v2432
      %v2804 = vsel %vm2769, %v2739, %v2432
      %v2805 = vsel %vm2769, %v2740, %v2432
      %v2806 = vsel %vm2769, %v2741, %v2432
      %v2807 = vsel %vm2769, %v2742, %v2432
      %v2808 = vsel %vm2769, %v2743, %v2432
      %v2809 = vsel %vm2769, %v2744, %v2432
      %v2810 = vsel %vm2769, %v2745, %v2432
      %v2811 = vsel %vm2769, %v2746, %v2432
      %v2812 = vsel %vm2769, %v2747, %v2432
      %v2813 = vsel %vm2769, %v2748, %v2432
      %v2814 = vsel %vm2769, %v2749, %v2432
      %v2815 = vsel %vm2769, %v2750, %v2432
      %v2816 = vsel %vm2769, %v2751, %v2432
      %v2817 = vsel %vm2769, %v2752, %v2432
      %v2818 = vsel %vm2769, %v2753, %v2432
      %v2819 = vsel %vm2769, %v2754, %v2432
      %v2820 = vsel %vm2769, %v2755, %v2432
      %v2821 = vsel %vm2769, %v2756, %v2432
      %v2822 = vsel %vm2769, %v2757, %v2432
      %v2823 = vsel %vm2769, %v2758, %v2432
      %v2824 = vsel %vm2769, %v2759, %v2432
      %v2825 = vsel %vm2769, %v2760, %v2432
      %v2826 = vsel %vm2769, %v2761, %v2432
      %v2827 = vsel %vm2769, %v2762, %v2432
      %v2828 = vsel %vm2769, %v2763, %v2432
      %v2829 = vsel %vm2769, %v2764, %v2432
      %v2830 = vsel %vm2769, %v2765, %v2432
      %v2831 = vsel %vm2769, %v2766, %v2432
      %v2832 = vsel %vm2769, %v2767, %v2432
      %v2833 = vsel %vm2769, %v2768, %v2432
      %v2834 = vld [vmem:[%s1] sm:$0xff]
      %v2835 = vld [vmem:[%s1 + $0x8] sm:$0xff]
      %v2836 = vld [vmem:[%s1 + $0x10] sm:$0xff]
      %v2837 = vld [vmem:[%s1 + $0x18] sm:$0xf]
      %v2838 = vld [vmem:[%s2] sm:$0x1]
      %v2840 = vlaneseq
      %v2841 = vshrl.u32 %v2840, 7
      %v2842 = vsub.s32 0, %v2841
      %v2843 = vrot.slane %v2838, %v2842
      %vm2845 = vcmask 228352
      %v2847 = vsel %vm2845, %v2770, 0
      %v2850 = vsel %vm2845, %v2771, 0
      %v2853 = vsel %vm2845, %v2772, 0
      %v2856 = vsel %vm2845, %v2773, 0
      %v2859 = vsel %vm2845, %v2774, 0
      %v2862 = vsel %vm2845, %v2775, 0
      %v2865 = vsel %vm2845, %v2776, 0
      %v2868 = vsel %vm2845, %v2777, 0
      %v2871 = vsel %vm2845, %v2778, 0
      %v2874 = vsel %vm2845, %v2779, 0
      %v2877 = vsel %vm2845, %v2780, 0
      %v2880 = vsel %vm2845, %v2781, 0
      %v2883 = vsel %vm2845, %v2782, 0
      %v2886 = vsel %vm2845, %v2783, 0
      %v2889 = vsel %vm2845, %v2784, 0
      %v2892 = vsel %vm2845, %v2785, 0
      %v2895 = vsel %vm2845, %v2786, 0
      %v2898 = vsel %vm2845, %v2787, 0
      %v2901 = vsel %vm2845, %v2788, 0
      %v2904 = vsel %vm2845, %v2789, 0
      %v2907 = vsel %vm2845, %v2790, 0
      %v2910 = vsel %vm2845, %v2791, 0
      %v2913 = vsel %vm2845, %v2792, 0
      %v2916 = vsel %vm2845, %v2793, 0
      %v2919 = vsel %vm2845, %v2794, 0
      %v2922 = vsel %vm2845, %v2795, 0
      %v2925 = vsel %vm2845, %v2796, 0
      %v2928 = vsel %vm2845, %v2797, 0
      %v2931 = vsel %vm2845, %v2798, 0
      %v2934 = vsel %vm2845, %v2799, 0
      %v2937 = vsel %vm2845, %v2800, 0
      %v2940 = vsel %vm2845, %v2801, 0
      %v2943 = vsel %vm2845, %v2802, 0
      %v2946 = vsel %vm2845, %v2803, 0
      %v2949 = vsel %vm2845, %v2804, 0
      %v2952 = vsel %vm2845, %v2805, 0
      %v2955 = vsel %vm2845, %v2806, 0
      %v2958 = vsel %vm2845, %v2807, 0
      %v2961 = vsel %vm2845, %v2808, 0
      %v2964 = vsel %vm2845, %v2809, 0
      %v2967 = vsel %vm2845, %v2810, 0
      %v2970 = vsel %vm2845, %v2811, 0
      %v2973 = vsel %vm2845, %v2812, 0
      %v2976 = vsel %vm2845, %v2813, 0
      %v2979 = vsel %vm2845, %v2814, 0
      %v2982 = vsel %vm2845, %v2815, 0
      %v2985 = vsel %vm2845, %v2816, 0
      %v2988 = vsel %vm2845, %v2817, 0
      %v2991 = vsel %vm2845, %v2818, 0
      %v2994 = vsel %vm2845, %v2819, 0
      %v2997 = vsel %vm2845, %v2820, 0
      %v3000 = vsel %vm2845, %v2821, 0
      %v3003 = vsel %vm2845, %v2822, 0
      %v3006 = vsel %vm2845, %v2823, 0
      %v3009 = vsel %vm2845, %v2824, 0
      %v3012 = vsel %vm2845, %v2825, 0
      %v3015 = vsel %vm2845, %v2826, 0
      %v3018 = vsel %vm2845, %v2827, 0
      %v3021 = vsel %vm2845, %v2828, 0
      %v3024 = vsel %vm2845, %v2829, 0
      %v3027 = vsel %vm2845, %v2830, 0
      %v3030 = vsel %vm2845, %v2831, 0
      %v3033 = vsel %vm2845, %v2832, 0
      %v3036 = vsel %vm2845, %v2833, 0
      %vm3038 = vcmask 1043456
      %v3040 = vsel %vm3038, %v2837, 0
      %3042 = vmatprep.subr.mxu0 0.0
      %3043 = vmatpush1.msra.mxu0 %v2834
      %3044 = vmatprep.subr.mxu0 0.0
      %3045 = vmatpush1.msra.mxu0 %v2835
      %3046 = vmatprep.subr.mxu0 0.0
      %3047 = vmatpush1.msra.mxu0 %v2836
      %3048 = vmatprep.subr.mxu0 0.0
      %3049 = vmatpush1.msra.mxu0 %v3040
      %3050 = vmatprep.subr.mxu0 0.0
      %3051 = vmatpush1.msra.mxu0 0.0
      %3052 = vmatprep.subr.mxu0 0.0
      %3053 = vmatpush1.msra.mxu0 0.0
      %3054 = vmatprep.subr.mxu0 0.0
      %3055 = vmatpush1.msra.mxu0 0.0
      %3056 = vmatprep.subr.mxu0 0.0
      %3057 = vmatpush1.msra.mxu0 0.0
      %3058 = vmatprep.subr.mxu0 0.0
      %3059 = vmatpush1.msra.mxu0 0.0
      %3060 = vmatprep.subr.mxu0 0.0
      %3061 = vmatpush1.msra.mxu0 0.0
      %3062 = vmatprep.subr.mxu0 0.0
      %3063 = vmatpush1.msra.mxu0 0.0
      %3064 = vmatprep.subr.mxu0 0.0
      %3065 = vmatpush1.msra.mxu0 0.0
      %3066 = vmatprep.subr.mxu0 0.0
      %3067 = vmatpush1.msra.mxu0 0.0
      %3068 = vmatprep.subr.mxu0 0.0
      %3069 = vmatpush1.msra.mxu0 0.0
      %3070 = vmatprep.subr.mxu0 0.0
      %3071 = vmatpush1.msra.mxu0 0.0
      %3072 = vmatprep.subr.mxu0 0.0
      %3073 = vmatpush1.msra.mxu0 0.0
      %3074 = vmatprep.subr.mxu0 0.0
      %3075 = vmatpush1.msra.mxu0 0.0
      %3076 = vmatprep.subr.mxu0 0.0
      %3077 = vmatpush1.msra.mxu0 0.0
      %3078 = vmatprep.subr.mxu0 0.0
      %3079 = vmatpush1.msra.mxu0 0.0
      %3080 = vmatprep.subr.mxu0 0.0
      %3081 = vmatpush1.msra.mxu0 0.0
      %3082 = vmatprep.subr.mxu0 0.0
      %3083 = vmatpush1.msra.mxu0 0.0
      %3084 = vmatprep.subr.mxu0 0.0
      %3085 = vmatpush1.msra.mxu0 0.0
      %3086 = vmatprep.subr.mxu0 0.0
      %3087 = vmatpush1.msra.mxu0 0.0
      %3088 = vmatprep.subr.mxu0 0.0
      %3089 = vmatpush1.msra.mxu0 0.0
      %3090 = vmatprep.subr.mxu0 0.0
      %3091 = vmatpush1.msra.mxu0 0.0
      %3092 = vmatprep.subr.mxu0 0.0
      %3093 = vmatpush1.msra.mxu0 0.0
      %3094 = vmatprep.subr.mxu0 0.0
      %3095 = vmatpush1.msra.mxu0 0.0
      %3096 = vmatprep.subr.mxu0 0.0
      %3097 = vmatpush1.msra.mxu0 0.0
      %3098 = vmatprep.subr.mxu0 0.0
      %3099 = vmatpush1.msra.mxu0 0.0
      %3100 = vmatprep.subr.mxu0 0.0
      %3101 = vmatpush1.msra.mxu0 0.0
      %3102 = vmatprep.subr.mxu0 0.0
      %3103 = vmatpush1.msra.mxu0 0.0
      %3104 = vmatprep.subr.mxu0 0.0
      %3105 = vmatpush1.msra.mxu0 0.0
      %3106 = vmatprep.mubr.f32.mxu0 0.0
      %3107 = vmatmul.mubr.f32.gmra.mrb[0].mxu0 %v2847
      %v3108 = vpop.f32.mrb[0].mxu0
      %v3109 = vadd.f32 %v2843, %v3108
      %v3110 = vpop.f32.mrb[0].mxu0
      %3111 = vmatprep.mubr.f32.mxu0 0.0
      %3112 = vmatmul.mubr.f32.gmra.mrb[0].mxu0 %v2850
      %v3113 = vpop.f32.mrb[0].mxu0
      %v3114 = vadd.f32 %v2843, %v3113
      %v3115 = vpop.f32.mrb[0].mxu0
      %3116 = vmatprep.mubr.f32.mxu0 0.0
      %3117 = vmatmul.mubr.f32.gmra.mrb[0].mxu0 %v2853
      %v3118 = vpop.f32.mrb[0].mxu0
      %v3119 = vadd.f32 %v2843, %v3118
      %v3120 = vpop.f32.mrb[0].mxu0
      %3121 = vmatprep.mubr.f32.mxu0 0.0
      %3122 = vmatmul.mubr.f32.gmra.mrb[0].mxu0 %v2856
      %v3123 = vpop.f32.mrb[0].mxu0
      %v3124 = vadd.f32 %v2843, %v3123
      %v3125 = vpop.f32.mrb[0].mxu0
      %3126 = vmatprep.mubr.f32.mxu0 0.0
      %3127 = vmatmul.mubr.f32.gmra.mrb[0].mxu0 %v2859
      %v3128 = vpop.f32.mrb[0].mxu0
      %v3129 = vadd.f32 %v2843, %v3128
      %v3130 = vpop.f32.mrb[0].mxu0
      %3131 = vmatprep.mubr.f32.mxu0 0.0
      %3132 = vmatmul.mubr.f32.gmra.mrb[0].mxu0 %v2862
      %v3133 = vpop.f32.mrb[0].mxu0
      %v3134 = vadd.f32 %v2843, %v3133
      %v3135 = vpop.f32.mrb[0].mxu0
      %3136 = vmatprep.mubr.f32.mxu0 0.0
      %3137 = vmatmul.mubr.f32.gmra.mrb[0].mxu0 %v2865
      %v3138 = vpop.f32.mrb[0].mxu0
      %v3139 = vadd.f32 %v2843, %v3138
      %v3140 = vpop.f32.mrb[0].mxu0
      %3141 = vmatprep.mubr.f32.mxu0 0.0
      %3142 = vmatmul.mubr.f32.gmra.mrb[0].mxu0 %v2868
      %v3143 = vpop.f32.mrb[0].mxu0
      %v3144 = vadd.f32 %v2843, %v3143
      %v3145 = vpop.f32.mrb[0].mxu0
      %3146 = vmatprep.mubr.f32.mxu0 0.0
      %3147 = vmatmul.mubr.f32.gmra.mrb[0].mxu0 %v2871
      %v3148 = vpop.f32.mrb[0].mxu0
      %v3149 = vadd.f32 %v2843, %v3148
      %v3150 = vpop.f32.mrb[0].mxu0
      %3151 = vmatprep.mubr.f32.mxu0 0.0
      %3152 = vmatmul.mubr.f32.gmra.mrb[0].mxu0 %v2874
      %v3153 = vpop.f32.mrb[0].mxu0
      %v3154 = vadd.f32 %v2843, %v3153
      %v3155 = vpop.f32.mrb[0].mxu0
      %3156 = vmatprep.mubr.f32.mxu0 0.0
      %3157 = vmatmul.mubr.f32.gmra.mrb[0].mxu0 %v2877
      %v3158 = vpop.f32.mrb[0].mxu0
      %v3159 = vadd.f32 %v2843, %v3158
      %v3160 = vpop.f32.mrb[0].mxu0
      %3161 = vmatprep.mubr.f32.mxu0 0.0
      %3162 = vmatmul.mubr.f32.gmra.mrb[0].mxu0 %v2880
      %v3163 = vpop.f32.mrb[0].mxu0
      %v3164 = vadd.f32 %v2843, %v3163
      %v3165 = vpop.f32.mrb[0].mxu0
      %3166 = vmatprep.mubr.f32.mxu0 0.0
      %3167 = vmatmul.mubr.f32.gmra.mrb[0].mxu0 %v2883
      %v3168 = vpop.f32.mrb[0].mxu0
      %v3169 = vadd.f32 %v2843, %v3168
      %v3170 = vpop.f32.mrb[0].mxu0
      %3171 = vmatprep.mubr.f32.mxu0 0.0
      %3172 = vmatmul.mubr.f32.gmra.mrb[0].mxu0 %v2886
      %v3173 = vpop.f32.mrb[0].mxu0
      %v3174 = vadd.f32 %v2843, %v3173
      %v3175 = vpop.f32.mrb[0].mxu0
      %3176 = vmatprep.mubr.f32.mxu0 0.0
      %3177 = vmatmul.mubr.f32.gmra.mrb[0].mxu0 %v2889
      %v3178 = vpop.f32.mrb[0].mxu0
      %v3179 = vadd.f32 %v2843, %v3178
      %v3180 = vpop.f32.mrb[0].mxu0
      %3181 = vmatprep.mubr.f32.mxu0 0.0
      %3182 = vmatmul.mubr.f32.gmra.mrb[0].mxu0 %v2892
      %v3183 = vpop.f32.mrb[0].mxu0
      %v3184 = vadd.f32 %v2843, %v3183
      %v3185 = vpop.f32.mrb[0].mxu0
      %3186 = vmatprep.mubr.f32.mxu0 0.0
      %3187 = vmatmul.mubr.f32.gmra.mrb[0].mxu0 %v2895
      %v3188 = vpop.f32.mrb[0].mxu0
      %v3189 = vadd.f32 %v2843, %v3188
      %v3190 = vpop.f32.mrb[0].mxu0
      %3191 = vmatprep.mubr.f32.mxu0 0.0
      %3192 = vmatmul.mubr.f32.gmra.mrb[0].mxu0 %v2898
      %v3193 = vpop.f32.mrb[0].mxu0
      %v3194 = vadd.f32 %v2843, %v3193
      %v3195 = vpop.f32.mrb[0].mxu0
      %3196 = vmatprep.mubr.f32.mxu0 0.0
      %3197 = vmatmul.mubr.f32.gmra.mrb[0].mxu0 %v2901
      %v3198 = vpop.f32.mrb[0].mxu0
      %v3199 = vadd.f32 %v2843, %v3198
      %v3200 = vpop.f32.mrb[0].mxu0
      %3201 = vmatprep.mubr.f32.mxu0 0.0
      %3202 = vmatmul.mubr.f32.gmra.mrb[0].mxu0 %v2904
      %v3203 = vpop.f32.mrb[0].mxu0
      %v3204 = vadd.f32 %v2843, %v3203
      %v3205 = vpop.f32.mrb[0].mxu0
      %3206 = vmatprep.mubr.f32.mxu0 0.0
      %3207 = vmatmul.mubr.f32.gmra.mrb[0].mxu0 %v2907
      %v3208 = vpop.f32.mrb[0].mxu0
      %v3209 = vadd.f32 %v2843, %v3208
      %v3210 = vpop.f32.mrb[0].mxu0
      %3211 = vmatprep.mubr.f32.mxu0 0.0
      %3212 = vmatmul.mubr.f32.gmra.mrb[0].mxu0 %v2910
      %v3213 = vpop.f32.mrb[0].mxu0
      %v3214 = vadd.f32 %v2843, %v3213
      %v3215 = vpop.f32.mrb[0].mxu0
      %3216 = vmatprep.mubr.f32.mxu0 0.0
      %3217 = vmatmul.mubr.f32.gmra.mrb[0].mxu0 %v2913
      %v3218 = vpop.f32.mrb[0].mxu0
      %v3219 = vadd.f32 %v2843, %v3218
      %v3220 = vpop.f32.mrb[0].mxu0
      %3221 = vmatprep.mubr.f32.mxu0 0.0
      %3222 = vmatmul.mubr.f32.gmra.mrb[0].mxu0 %v2916
      %v3223 = vpop.f32.mrb[0].mxu0
      %v3224 = vadd.f32 %v2843, %v3223
      %v3225 = vpop.f32.mrb[0].mxu0
      %3226 = vmatprep.mubr.f32.mxu0 0.0
      %3227 = vmatmul.mubr.f32.gmra.mrb[0].mxu0 %v2919
      %v3228 = vpop.f32.mrb[0].mxu0
      %v3229 = vadd.f32 %v2843, %v3228
      %v3230 = vpop.f32.mrb[0].mxu0
      %3231 = vmatprep.mubr.f32.mxu0 0.0
      %3232 = vmatmul.mubr.f32.gmra.mrb[0].mxu0 %v2922
      %v3233 = vpop.f32.mrb[0].mxu0
      %v3234 = vadd.f32 %v2843, %v3233
      %v3235 = vpop.f32.mrb[0].mxu0
      %3236 = vmatprep.mubr.f32.mxu0 0.0
      %3237 = vmatmul.mubr.f32.gmra.mrb[0].mxu0 %v2925
      %v3238 = vpop.f32.mrb[0].mxu0
      %v3239 = vadd.f32 %v2843, %v3238
      %v3240 = vpop.f32.mrb[0].mxu0
      %3241 = vmatprep.mubr.f32.mxu0 0.0
      %3242 = vmatmul.mubr.f32.gmra.mrb[0].mxu0 %v2928
      %v3243 = vpop.f32.mrb[0].mxu0
      %v3244 = vadd.f32 %v2843, %v3243
      %v3245 = vpop.f32.mrb[0].mxu0
      %3246 = vmatprep.mubr.f32.mxu0 0.0
      %3247 = vmatmul.mubr.f32.gmra.mrb[0].mxu0 %v2931
      %v3248 = vpop.f32.mrb[0].mxu0
      %v3249 = vadd.f32 %v2843, %v3248
      %v3250 = vpop.f32.mrb[0].mxu0
      %3251 = vmatprep.mubr.f32.mxu0 0.0
      %3252 = vmatmul.mubr.f32.gmra.mrb[0].mxu0 %v2934
      %v3253 = vpop.f32.mrb[0].mxu0
      %v3254 = vadd.f32 %v2843, %v3253
      %v3255 = vpop.f32.mrb[0].mxu0
      %3256 = vmatprep.mubr.f32.mxu0 0.0
      %3257 = vmatmul.mubr.f32.gmra.mrb[0].mxu0 %v2937
      %v3258 = vpop.f32.mrb[0].mxu0
      %v3259 = vadd.f32 %v2843, %v3258
      %v3260 = vpop.f32.mrb[0].mxu0
      %3261 = vmatprep.mubr.f32.mxu0 0.0
      %3262 = vmatmul.mubr.f32.gmra.mrb[0].mxu0 %v2940
      %v3263 = vpop.f32.mrb[0].mxu0
      %v3264 = vadd.f32 %v2843, %v3263
      %v3265 = vpop.f32.mrb[0].mxu0
      %3266 = vmatprep.mubr.f32.mxu0 0.0
      %3267 = vmatmul.mubr.f32.gmra.mrb[0].mxu0 %v2943
      %v3268 = vpop.f32.mrb[0].mxu0
      %v3269 = vadd.f32 %v2843, %v3268
      %v3270 = vpop.f32.mrb[0].mxu0
      %3271 = vmatprep.mubr.f32.mxu0 0.0
      %3272 = vmatmul.mubr.f32.gmra.mrb[0].mxu0 %v2946
      %v3273 = vpop.f32.mrb[0].mxu0
      %v3274 = vadd.f32 %v2843, %v3273
      %v3275 = vpop.f32.mrb[0].mxu0
      %3276 = vmatprep.mubr.f32.mxu0 0.0
      %3277 = vmatmul.mubr.f32.gmra.mrb[0].mxu0 %v2949
      %v3278 = vpop.f32.mrb[0].mxu0
      %v3279 = vadd.f32 %v2843, %v3278
      %v3280 = vpop.f32.mrb[0].mxu0
      %3281 = vmatprep.mubr.f32.mxu0 0.0
      %3282 = vmatmul.mubr.f32.gmra.mrb[0].mxu0 %v2952
      %v3283 = vpop.f32.mrb[0].mxu0
      %v3284 = vadd.f32 %v2843, %v3283
      %v3285 = vpop.f32.mrb[0].mxu0
      %3286 = vmatprep.mubr.f32.mxu0 0.0
      %3287 = vmatmul.mubr.f32.gmra.mrb[0].mxu0 %v2955
      %v3288 = vpop.f32.mrb[0].mxu0
      %v3289 = vadd.f32 %v2843, %v3288
      %v3290 = vpop.f32.mrb[0].mxu0
      %3291 = vmatprep.mubr.f32.mxu0 0.0
      %3292 = vmatmul.mubr.f32.gmra.mrb[0].mxu0 %v2958
      %v3293 = vpop.f32.mrb[0].mxu0
      %v3294 = vadd.f32 %v2843, %v3293
      %v3295 = vpop.f32.mrb[0].mxu0
      %3296 = vmatprep.mubr.f32.mxu0 0.0
      %3297 = vmatmul.mubr.f32.gmra.mrb[0].mxu0 %v2961
      %v3298 = vpop.f32.mrb[0].mxu0
      %v3299 = vadd.f32 %v2843, %v3298
      %v3300 = vpop.f32.mrb[0].mxu0
      %3301 = vmatprep.mubr.f32.mxu0 0.0
      %3302 = vmatmul.mubr.f32.gmra.mrb[0].mxu0 %v2964
      %v3303 = vpop.f32.mrb[0].mxu0
      %v3304 = vadd.f32 %v2843, %v3303
      %v3305 = vpop.f32.mrb[0].mxu0
      %3306 = vmatprep.mubr.f32.mxu0 0.0
      %3307 = vmatmul.mubr.f32.gmra.mrb[0].mxu0 %v2967
      %v3308 = vpop.f32.mrb[0].mxu0
      %v3309 = vadd.f32 %v2843, %v3308
      %v3310 = vpop.f32.mrb[0].mxu0
      %3311 = vmatprep.mubr.f32.mxu0 0.0
      %3312 = vmatmul.mubr.f32.gmra.mrb[0].mxu0 %v2970
      %v3313 = vpop.f32.mrb[0].mxu0
      %v3314 = vadd.f32 %v2843, %v3313
      %v3315 = vpop.f32.mrb[0].mxu0
      %3316 = vmatprep.mubr.f32.mxu0 0.0
      %3317 = vmatmul.mubr.f32.gmra.mrb[0].mxu0 %v2973
      %v3318 = vpop.f32.mrb[0].mxu0
      %v3319 = vadd.f32 %v2843, %v3318
      %v3320 = vpop.f32.mrb[0].mxu0
      %3321 = vmatprep.mubr.f32.mxu0 0.0
      %3322 = vmatmul.mubr.f32.gmra.mrb[0].mxu0 %v2976
      %v3323 = vpop.f32.mrb[0].mxu0
      %v3324 = vadd.f32 %v2843, %v3323
      %v3325 = vpop.f32.mrb[0].mxu0
      %3326 = vmatprep.mubr.f32.mxu0 0.0
      %3327 = vmatmul.mubr.f32.gmra.mrb[0].mxu0 %v2979
      %v3328 = vpop.f32.mrb[0].mxu0
      %v3329 = vadd.f32 %v2843, %v3328
      %v3330 = vpop.f32.mrb[0].mxu0
      %3331 = vmatprep.mubr.f32.mxu0 0.0
      %3332 = vmatmul.mubr.f32.gmra.mrb[0].mxu0 %v2982
      %v3333 = vpop.f32.mrb[0].mxu0
      %v3334 = vadd.f32 %v2843, %v3333
      %v3335 = vpop.f32.mrb[0].mxu0
      %3336 = vmatprep.mubr.f32.mxu0 0.0
      %3337 = vmatmul.mubr.f32.gmra.mrb[0].mxu0 %v2985
      %v3338 = vpop.f32.mrb[0].mxu0
      %v3339 = vadd.f32 %v2843, %v3338
      %v3340 = vpop.f32.mrb[0].mxu0
      %3341 = vmatprep.mubr.f32.mxu0 0.0
      %3342 = vmatmul.mubr.f32.gmra.mrb[0].mxu0 %v2988
      %v3343 = vpop.f32.mrb[0].mxu0
      %v3344 = vadd.f32 %v2843, %v3343
      %v3345 = vpop.f32.mrb[0].mxu0
      %3346 = vmatprep.mubr.f32.mxu0 0.0
      %3347 = vmatmul.mubr.f32.gmra.mrb[0].mxu0 %v2991
      %v3348 = vpop.f32.mrb[0].mxu0
      %v3349 = vadd.f32 %v2843, %v3348
      %v3350 = vpop.f32.mrb[0].mxu0
      %3351 = vmatprep.mubr.f32.mxu0 0.0
      %3352 = vmatmul.mubr.f32.gmra.mrb[0].mxu0 %v2994
      %v3353 = vpop.f32.mrb[0].mxu0
      %v3354 = vadd.f32 %v2843, %v3353
      %v3355 = vpop.f32.mrb[0].mxu0
      %3356 = vmatprep.mubr.f32.mxu0 0.0
      %3357 = vmatmul.mubr.f32.gmra.mrb[0].mxu0 %v2997
      %v3358 = vpop.f32.mrb[0].mxu0
      %v3359 = vadd.f32 %v2843, %v3358
      %v3360 = vpop.f32.mrb[0].mxu0
      %3361 = vmatprep.mubr.f32.mxu0 0.0
      %3362 = vmatmul.mubr.f32.gmra.mrb[0].mxu0 %v3000
      %v3363 = vpop.f32.mrb[0].mxu0
      %v3364 = vadd.f32 %v2843, %v3363
      %v3365 = vpop.f32.mrb[0].mxu0
      %3366 = vmatprep.mubr.f32.mxu0 0.0
      %3367 = vmatmul.mubr.f32.gmra.mrb[0].mxu0 %v3003
      %v3368 = vpop.f32.mrb[0].mxu0
      %v3369 = vadd.f32 %v2843, %v3368
      %v3370 = vpop.f32.mrb[0].mxu0
      %3371 = vmatprep.mubr.f32.mxu0 0.0
      %3372 = vmatmul.mubr.f32.gmra.mrb[0].mxu0 %v3006
      %v3373 = vpop.f32.mrb[0].mxu0
      %v3374 = vadd.f32 %v2843, %v3373
      %v3375 = vpop.f32.mrb[0].mxu0
      %3376 = vmatprep.mubr.f32.mxu0 0.0
      %3377 = vmatmul.mubr.f32.gmra.mrb[0].mxu0 %v3009
      %v3378 = vpop.f32.mrb[0].mxu0
      %v3379 = vadd.f32 %v2843, %v3378
      %v3380 = vpop.f32.mrb[0].mxu0
      %3381 = vmatprep.mubr.f32.mxu0 0.0
      %3382 = vmatmul.mubr.f32.gmra.mrb[0].mxu0 %v3012
      %v3383 = vpop.f32.mrb[0].mxu0
      %v3384 = vadd.f32 %v2843, %v3383
      %v3385 = vpop.f32.mrb[0].mxu0
      %3386 = vmatprep.mubr.f32.mxu0 0.0
      %3387 = vmatmul.mubr.f32.gmra.mrb[0].mxu0 %v3015
      %v3388 = vpop.f32.mrb[0].mxu0
      %v3389 = vadd.f32 %v2843, %v3388
      %v3390 = vpop.f32.mrb[0].mxu0
      %3391 = vmatprep.mubr.f32.mxu0 0.0
      %3392 = vmatmul.mubr.f32.gmra.mrb[0].mxu0 %v3018
      %v3393 = vpop.f32.mrb[0].mxu0
      %v3394 = vadd.f32 %v2843, %v3393
      %v3395 = vpop.f32.mrb[0].mxu0
      %3396 = vmatprep.mubr.f32.mxu0 0.0
      %3397 = vmatmul.mubr.f32.gmra.mrb[0].mxu0 %v3021
      %v3398 = vpop.f32.mrb[0].mxu0
      %v3399 = vadd.f32 %v2843, %v3398
      %v3400 = vpop.f32.mrb[0].mxu0
      %3401 = vmatprep.mubr.f32.mxu0 0.0
      %3402 = vmatmul.mubr.f32.gmra.mrb[0].mxu0 %v3024
      %v3403 = vpop.f32.mrb[0].mxu0
      %v3404 = vadd.f32 %v2843, %v3403
      %v3405 = vpop.f32.mrb[0].mxu0
      %3406 = vmatprep.mubr.f32.mxu0 0.0
      %3407 = vmatmul.mubr.f32.gmra.mrb[0].mxu0 %v3027
      %v3408 = vpop.f32.mrb[0].mxu0
      %v3409 = vadd.f32 %v2843, %v3408
      %v3410 = vpop.f32.mrb[0].mxu0
      %3411 = vmatprep.mubr.f32.mxu0 0.0
      %3412 = vmatmul.mubr.f32.gmra.mrb[0].mxu0 %v3030
      %v3413 = vpop.f32.mrb[0].mxu0
      %v3414 = vadd.f32 %v2843, %v3413
      %v3415 = vpop.f32.mrb[0].mxu0
      %3416 = vmatprep.mubr.f32.mxu0 0.0
      %3417 = vmatmul.mubr.f32.gmra.mrb[0].mxu0 %v3033
      %v3418 = vpop.f32.mrb[0].mxu0
      %v3419 = vadd.f32 %v2843, %v3418
      %v3420 = vpop.f32.mrb[0].mxu0
      %3421 = vmatprep.mubr.f32.mxu0 0.0
      %3422 = vmatmul.mubr.f32.gmra.mrb[0].mxu0 %v3036
      %v3423 = vpop.f32.mrb[0].mxu0
      %v3424 = vadd.f32 %v2843, %v3423
      %v3425 = vpop.f32.mrb[0].mxu0
      %3426 = vdwg.mxu0
      %3427 = vst [vmem:[%s170] sm:$0xff] %v3109
      %3428 = vst [vmem:[%s170 + $0x8] sm:$0xff] %v3114
      %3429 = vst [vmem:[%s170 + $0x10] sm:$0xff] %v3119
      %3430 = vst [vmem:[%s170 + $0x18] sm:$0xff] %v3124
      %3431 = vst [vmem:[%s170 + $0x20] sm:$0xff] %v3129
      %3432 = vst [vmem:[%s170 + $0x28] sm:$0xff] %v3134
      %3433 = vst [vmem:[%s170 + $0x30] sm:$0xff] %v3139
      %3434 = vst [vmem:[%s170 + $0x38] sm:$0xff] %v3144
      %3435 = vst [vmem:[%s170 + $0x40] sm:$0xff] %v3149
      %3436 = vst [vmem:[%s170 + $0x48] sm:$0xff] %v3154
      %3437 = vst [vmem:[%s170 + $0x50] sm:$0xff] %v3159
      %3438 = vst [vmem:[%s170 + $0x58] sm:$0xff] %v3164
      %3439 = vst [vmem:[%s170 + $0x60] sm:$0xff] %v3169
      %3440 = vst [vmem:[%s170 + $0x68] sm:$0xff] %v3174
      %3441 = vst [vmem:[%s170 + $0x70] sm:$0xff] %v3179
      %3442 = vst [vmem:[%s170 + $0x78] sm:$0xff] %v3184
      %3443 = vst [vmem:[%s170 + $0x80] sm:$0xff] %v3189
      %3444 = vst [vmem:[%s170 + $0x88] sm:$0xff] %v3194
      %3445 = vst [vmem:[%s170 + $0x90] sm:$0xff] %v3199
      %3446 = vst [vmem:[%s170 + $0x98] sm:$0xff] %v3204
      %3447 = vst [vmem:[%s170 + $0xa0] sm:$0xff] %v3209
      %3448 = vst [vmem:[%s170 + $0xa8] sm:$0xff] %v3214
      %3449 = vst [vmem:[%s170 + $0xb0] sm:$0xff] %v3219
      %3450 = vst [vmem:[%s170 + $0xb8] sm:$0xff] %v3224
      %3451 = vst [vmem:[%s170 + $0xc0] sm:$0xff] %v3229
      %3452 = vst [vmem:[%s170 + $0xc8] sm:$0xff] %v3234
      %3453 = vst [vmem:[%s170 + $0xd0] sm:$0xff] %v3239
      %3454 = vst [vmem:[%s170 + $0xd8] sm:$0xff] %v3244
      %3455 = vst [vmem:[%s170 + $0xe0] sm:$0xff] %v3249
      %3456 = vst [vmem:[%s170 + $0xe8] sm:$0xff] %v3254
      %3457 = vst [vmem:[%s170 + $0xf0] sm:$0xff] %v3259
      %3458 = vst [vmem:[%s170 + $0xf8] sm:$0xff] %v3264
      %3459 = vst [vmem:[%s170 + $0x100] sm:$0xff] %v3269
      %3460 = vst [vmem:[%s170 + $0x108] sm:$0xff] %v3274
      %3461 = vst [vmem:[%s170 + $0x110] sm:$0xff] %v3279
      %3462 = vst [vmem:[%s170 + $0x118] sm:$0xff] %v3284
      %3463 = vst [vmem:[%s170 + $0x120] sm:$0xff] %v3289
      %3464 = vst [vmem:[%s170 + $0x128] sm:$0xff] %v3294
      %3465 = vst [vmem:[%s170 + $0x130] sm:$0xff] %v3299
      %3466 = vst [vmem:[%s170 + $0x138] sm:$0xff] %v3304
      %3467 = vst [vmem:[%s170 + $0x140] sm:$0xff] %v3309
      %3468 = vst [vmem:[%s170 + $0x148] sm:$0xff] %v3314
      %3469 = vst [vmem:[%s170 + $0x150] sm:$0xff] %v3319
      %3470 = vst [vmem:[%s170 + $0x158] sm:$0xff] %v3324
      %3471 = vst [vmem:[%s170 + $0x160] sm:$0xff] %v3329
      %3472 = vst [vmem:[%s170 + $0x168] sm:$0xff] %v3334
      %3473 = vst [vmem:[%s170 + $0x170] sm:$0xff] %v3339
      %3474 = vst [vmem:[%s170 + $0x178] sm:$0xff] %v3344
      %3475 = vst [vmem:[%s170 + $0x180] sm:$0xff] %v3349
      %3476 = vst [vmem:[%s170 + $0x188] sm:$0xff] %v3354
      %3477 = vst [vmem:[%s170 + $0x190] sm:$0xff] %v3359
      %3478 = vst [vmem:[%s170 + $0x198] sm:$0xff] %v3364
      %3479 = vst [vmem:[%s170 + $0x1a0] sm:$0xff] %v3369
      %3480 = vst [vmem:[%s170 + $0x1a8] sm:$0xff] %v3374
      %3481 = vst [vmem:[%s170 + $0x1b0] sm:$0xff] %v3379
      %3482 = vst [vmem:[%s170 + $0x1b8] sm:$0xff] %v3384
      %3483 = vst [vmem:[%s170 + $0x1c0] sm:$0xff] %v3389
      %3484 = vst [vmem:[%s170 + $0x1c8] sm:$0xff] %v3394
      %3485 = vst [vmem:[%s170 + $0x1d0] sm:$0xff] %v3399
      %3486 = vst [vmem:[%s170 + $0x1d8] sm:$0xff] %v3404
      %3487 = vst [vmem:[%s170 + $0x1e0] sm:$0xff] %v3409
      %3488 = vst [vmem:[%s170 + $0x1e8] sm:$0xff] %v3414
      %3489 = vst [vmem:[%s170 + $0x1f0] sm:$0xff] %v3419
      %3490 = vst [vmem:[%s170 + $0x1f8] sm:$0xff] %v3424
      %p3491 = scmp.lt.s32.totalorder %s14, 1
      %s3492 = scalar_select %p3491, %s14, 1
      %s3493 = smul.addr %s3492, 64
      %s3494 = smul.addr %s3493, 8
      %s3495 = scalar_lea.vmem %s3, %s3494
      // Predicated region
      $region33: #{temporal_gate_forward.1} parent=31 // pred_check
        %p3496 = pneg %p100
      $region34: #{temporal_gate_forward.1} parent=31 // pred_check_branch
        %3498 = sbr.rel (%p3496) target = $region36
      $region35: #{temporal_gate_forward.1} parent=31 // pred_region
        _
      $region36: #{temporal_gate_forward.1} parent=31 // pred_fallthru
        _
    $region32: #{temporal_gate_forward.1} parent=5 // pred_fallthru
      _
    %p3499 = scmp.le.s32.totalorder 2, %s9
    // Predicated region
    $region37: #{temporal_gate_forward.1} parent=5 // pred_check
      %p3500 = pneg %p3499
    $region38: #{temporal_gate_forward.1} parent=5 // pred_check_branch
      %3502 = sbr.rel (%p3500) target = $region40
    $region39: #{temporal_gate_forward.1} parent=5 // pred_region
      %s3503 = ssub.s32 %s9, 2
      // Predicated region
      $region41: #{temporal_gate_forward.1} parent=39 // pred_check
        %p3504 = pneg %p106
      $region42: #{temporal_gate_forward.1} parent=39 // pred_check_branch
        %3506 = sbr.rel (%p3504) target = $region44
      $region43: #{temporal_gate_forward.1} parent=39 // pred_region
        %p3507 = scmp.lt.s32.totalorder %s15, 1
        %s3508 = scalar_select %p3507, %s15, 1
        %s3509 = smul.addr %s3508, 64
        %s3510 = smul.addr %s3509, 8
        %s3511 = scalar_lea.vmem %s3, %s3510
      $region44: #{temporal_gate_forward.1} parent=39 // pred_fallthru
        _
    $region40: #{temporal_gate_forward.1} parent=5 // pred_fallthru
      _
  $region6: #{temporal_gate_forward.1} parent=0 // loop_footer
    %s13 = sadd.s32 1, %s9
  $region7: #{temporal_gate_forward.1} parent=0 // loop_footer_branch
    %8 = sbr.rel target = $region3
  $region8: #{temporal_gate_forward.1} parent=0 // loop_exit
    _

</llo_original>
